<compile_context>
chip_gen: v7x
topology: tpu7x:2x2x1
jax: 0.10.0
libtpu: 0.0.40
codegen_flags: <defaults>
</compile_context>

<pallas_src>
import jax
import jax.numpy as jnp
from jax.experimental import pallas as pl
from jax.experimental.pallas import tpu as pltpu

FLOW_LENGTH = 4
P_MU = 0.0        # Flow.mean
P_STD = 1.0       # Flow.std
EPS = 1e-7        # safe_log epsilon

# SMEM scalar slots
SC_FLOW_W = 0
SC_FLOW_B = 4
SC_FLOW_U = 8
SC_BETA = 12
SC_B_MU = 13
SC_B_LV = 14
SC_LEN = 16


def _up8(x):
    return (x + 7) // 8 * 8


def _pack_layout(in_dim, l_dim, h_dim, n_classes):
    """Row offsets of the single packed weight array (all sections 8-row aligned)."""
    lanes = max(l_dim, h_dim)
    off_ws = 0                                   # [in_dim, l_dim]
    off_mulv = _up8(off_ws + in_dim)             # [2, l_dim]  (rows: w_mu, w_lv)
    off_bias = _up8(off_mulv + 2)                # 5 rows: b_s, w_dec, b_dec, b1, b2
    off_w1 = _up8(off_bias + 5)                  # [l_dim, h_dim]
    off_w2 = _up8(off_w1 + l_dim)                # [h_dim, n_classes]
    rows = _up8(off_w2 + h_dim)
    return dict(lanes=lanes, ws=off_ws, mulv=off_mulv, bias=off_bias,
                w1=off_w1, w2=off_w2, rows=rows)


# ----------------------------------------------------------------------------
# Parameter packing (done once, outside the per-call path).
# ----------------------------------------------------------------------------
def pack_params(params, in_dim, l_dim, h_dim, n_classes):
    lay = _pack_layout(in_dim, l_dim, h_dim, n_classes)
    wpack = jnp.zeros((lay["rows"], lay["lanes"]), jnp.float32)
    wpack = wpack.at[lay["ws"]:lay["ws"] + in_dim, 0:l_dim].set(params["w_s"])
    wmulv = jnp.concatenate([params["w_mu"], params["w_lv"]], axis=0)   # [2, L]
    wpack = wpack.at[lay["mulv"]:lay["mulv"] + 2, 0:l_dim].set(wmulv)
    ob = lay["bias"]
    wpack = wpack.at[ob + 0, 0:l_dim].set(params["b_s"][0])
    wpack = wpack.at[ob + 1, 0:l_dim].set(params["w_dec"][0])
    wpack = wpack.at[ob + 2, 0:l_dim].set(params["b_dec"][0])
    wpack = wpack.at[ob + 3, 0:h_dim].set(params["b1"][0])
    wpack = wpack.at[ob + 4, 0:n_classes].set(params["b2"][0])
    wpack = wpack.at[lay["w1"]:lay["w1"] + l_dim, 0:h_dim].set(params["w1"])
    wpack = wpack.at[lay["w2"]:lay["w2"] + h_dim, 0:n_classes].set(params["w2"])

    scal = jnp.zeros((SC_LEN,), jnp.float32)
    scal = scal.at[SC_FLOW_W:SC_FLOW_W + FLOW_LENGTH].set(params["flow_w"][:, 0])
    scal = scal.at[SC_FLOW_B:SC_FLOW_B + FLOW_LENGTH].set(params["flow_b"][:, 0])
    scal = scal.at[SC_FLOW_U:SC_FLOW_U + FLOW_LENGTH].set(params["flow_u"][:, 0])
    scal = scal.at[SC_BETA].set(params["beta"][0, 0])
    scal = scal.at[SC_B_MU].set(params["b_mu"][0, 0])
    scal = scal.at[SC_B_LV].set(params["b_lv"][0, 0])
    return wpack, scal


# ----------------------------------------------------------------------------
# Fused kernel builder: embed (all graphs) + classify + metric in one pallas_call.
# ----------------------------------------------------------------------------
def build_flow_forward(B, N, in_dim, l_dim, h_dim, n_classes):
    BN = B * N
    F, L, H, C = in_dim, l_dim, h_dim, n_classes
    lay = _pack_layout(F, L, H, C)

    def kernel(g_ref, h_ref, lbl_ref, wpack_ref, sc_ref, out_ref, gbd_ref):
        # ---- Block-diagonal adjacency assembled once in VMEM scratch (VPU stores,
        #      off the MXU).  One [64,64] operand replaces 4-way batched einsums.
        gbd_ref[...] = jnp.zeros((BN, BN), jnp.float32)
        for b in range(B):
            gbd_ref[b * N:(b + 1) * N, b * N:(b + 1) * N] = g_ref[b]
        gbd = gbd_ref[...]

        # ---- norm_g folded into the right operands: gn @ v == g @ (v * inv_deg),
        #      with inv_deg[j] = 1 / sum_k g[j, k].  Lane reduce, not an MXU matmul.
        deg = jnp.sum(gbd, axis=1, keepdims=True)                 # [BN, 1]
        inv_deg = 1.0 / deg                                       # matches reference (no zero-deg guard)

        h_flat = h_ref[...].reshape(BN, F)                        # [BN, F]

        # ---- s_gcn: h1 = ReLU((gn @ h) @ Ws + bs)
        ws = wpack_ref[lay["ws"]:lay["ws"] + F, 0:L]              # [F, L]
        bs = wpack_ref[lay["bias"] + 0:lay["bias"] + 1, 0:L]      # [1, L]
        ag = jnp.dot(gbd, h_flat * inv_deg,
                     preferred_element_type=jnp.float32)          # [BN, F]
        h1 = jnp.maximum(
            jnp.dot(ag, ws, preferred_element_type=jnp.float32) + bs, 0.0)   # [BN, L] (== rs)

        # ---- mu/logvar heads, thin-first:  (gn @ h1) @ W == gn @ (h1 @ W)
        wmulv = wpack_ref[lay["mulv"]:lay["mulv"] + 2, 0:L]       # [2, L] rows (w_mu; w_lv)
        hm = jax.lax.dot_general(h1, wmulv, (((1,), (1,)), ((), ())),
                                 preferred_element_type=jnp.float32)        # [BN, 2]
        head = jnp.dot(gbd, hm * inv_deg,
                       preferred_element_type=jnp.float32)        # [BN, 2]
        b_mu = sc_ref[SC_B_MU]
        b_lv = sc_ref[SC_B_LV]
        mu = jnp.maximum(head[:, 0:1] + b_mu, 0.0)                # [BN, 1]
        logvar = jnp.maximum(head[:, 1:2] + b_lv, 0.0)            # [BN, 1]

        # ---- reparameterize (eval mode): z0 = mu.
        # TODO(synk): training-mode eps ~ N(0,1) sampling (torch.randn_like) omitted.
        z0 = mu

        # ---- Planar normalizing flow, dim=1, flow_length=4 (unrolled, SMEM scalars).
        z = z0
        logj = jnp.zeros_like(z)
        for k in range(FLOW_LENGTH):
            w = sc_ref[SC_FLOW_W + k]
            bk = sc_ref[SC_FLOW_B + k]
            u = sc_ref[SC_FLOW_U + k]
            t = jnp.tanh(z * w + bk)
            psi = (1.0 - t * t) * w
            det = 1.0 + psi * u
            logj = logj + jnp.log(jnp.abs(det) + EPS)             # safe_log(|det|)
            z = z + u * t
        zk = z

        # ---- KL(z0, mu, logvar, log_jacobians, zk)  (loggaussian with log(2.5*sigma))
        sigma = jnp.exp(0.5 * logvar)
        logqz0 = -0.5 * ((z0 - mu) / sigma) ** 2 - jnp.log(2.5 * sigma)
        logpz = -0.5 * ((zk - P_MU) / P_STD) ** 2 - jnp.log(2.5 * P_STD)
        kl_mean = jnp.mean(logqz0 - logj - logpz)                 # kls.mean()

        # ---- zk = sigmoid(beta * zk)
        zs = jax.nn.sigmoid(sc_ref[SC_BETA] * zk)                 # [BN, 1]

        # ---- dec GCN, rank-1 factored: d = ReLU((gn @ zs) * w_dec + b_dec)
        wdec = wpack_ref[lay["bias"] + 1:lay["bias"] + 2, 0:L]    # [1, L]
        bdec = wpack_ref[lay["bias"] + 2:lay["bias"] + 3, 0:L]    # [1, L]
        dsc = jnp.dot(gbd, zs * inv_deg,
                      preferred_element_type=jnp.float32)         # [BN, 1]
        d = jnp.maximum(dsc * wdec + bdec, 0.0)                   # [BN, L]

        # ---- mse(rs, ds): rs == h1, never leaves VMEM.
        diff = h1 - d
        mse = jnp.mean(diff * diff)

        # ---- graph embedding: h_graph[b] = h1[b].T @ zs[b]  (sublane-group reduce,
        #      VPU/XLU slots, off the MXU serial chain)
        hg = jnp.sum((h1 * zs).reshape(B, N, L), axis=1)          # [B, L]

        # ---- classifier head (dropout = identity in eval)
        w1 = wpack_ref[lay["w1"]:lay["w1"] + L, 0:H]              # [L, H]
        b1 = wpack_ref[lay["bias"] + 3:lay["bias"] + 4, 0:H]      # [1, H]
        w2 = wpack_ref[lay["w2"]:lay["w2"] + H, 0:C]              # [H, C]
        b2 = wpack_ref[lay["bias"] + 4:lay["bias"] + 5, 0:C]      # [1, C]
        x = jnp.maximum(
            jnp.dot(hg, w1, preferred_element_type=jnp.float32) + b1, 0.0)
        logits = jnp.dot(x, w2, preferred_element_type=jnp.float32) + b2     # [B, C]

        # ---- log_softmax along classes
        m = jnp.max(logits, axis=1, keepdims=True)
        lse = m + jnp.log(jnp.sum(jnp.exp(logits - m), axis=1, keepdims=True))
        lp = logits - lse                                         # [B, C]

        # ---- metric: nll + mse + kl.mean; accuracy
        col = jax.lax.broadcasted_iota(jnp.int32, (B, C), 1)
        lbl = lbl_ref[...]                                        # [B, 1] int32
        onehot = (col == lbl).astype(jnp.float32)
        nll = -jnp.sum(onehot * lp) / B                           # F.nll_loss (mean)

        maxv = jnp.max(lp, axis=1, keepdims=True)
        cand = jnp.where(lp >= maxv, col, C)
        preds = jnp.min(cand, axis=1, keepdims=True)              # first-max, like torch.max
        acc = jnp.mean((preds == lbl).astype(jnp.float32))

        out_ref[0, 0] = nll + mse + kl_mean
        out_ref[0, 1] = acc

    vmem = pl.BlockSpec(memory_space=pltpu.MemorySpace.VMEM)
    smem = pl.BlockSpec(memory_space=pltpu.MemorySpace.SMEM)

    # Single grid-less call: 5 input DMAs (g, h, labels, packed weights, SMEM scalars),
    # one (1,2) SMEM output.  Working set << default scoped VMEM on v5e/v6e/v7x.
    # For many minibatches, add a leading grid axis over stacked batches here
    # (BlockSpecs on g/h/labels, loss/acc accumulated in scratch) and mark it
    # "parallel" to engage both TensorCores on v7x.
    call = pl.pallas_call(
        kernel,
        out_shape=jax.ShapeDtypeStruct((1, 2), jnp.float32),
        in_specs=[vmem, vmem, vmem, vmem, smem],
        out_specs=smem,
        scratch_shapes=[pltpu.VMEM((BN, BN), jnp.float32)],
    )

    @jax.jit
    def fwd(gs, hs, labels, wpack, scal):
        lbl = labels.reshape(B, 1).astype(jnp.int32)
        out = call(gs, hs, lbl, wpack, scal)
        return out[0, 0], out[0, 1]

    return fwd


# ----------------------------------------------------------------------------
# Deterministic parameter init (synthetic; shapes from Flow.__init__).
# ----------------------------------------------------------------------------
def init_params(key, in_dim, l_dim, h_dim, n_classes):
    ks = jax.random.split(key, 12)

    def w(k, shape, scale=None):
        s = scale if scale is not None else 1.0 / float(max(shape[0], 1)) ** 0.5
        return (jax.random.normal(k, shape, jnp.float32) * s).astype(jnp.float32)

    return {
        # s_gcn: Linear(in_dim, l_dim) stored as W.T for right-multiplication
        "w_s": w(ks[0], (in_dim, l_dim)),
        "b_s": jnp.zeros((1, l_dim), jnp.float32),
        # mu / logvar: Linear(l_dim, 1) weight stored as (1, l_dim) row
        "w_mu": w(ks[1], (1, l_dim), 0.2),
        "b_mu": jnp.zeros((1, 1), jnp.float32),
        "w_lv": w(ks[2], (1, l_dim), 0.2),
        "b_lv": jnp.zeros((1, 1), jnp.float32),
        # dec: Linear(1, l_dim) weight.T stored as (1, l_dim)
        "w_dec": w(ks[3], (1, l_dim), 0.5),
        "b_dec": jnp.zeros((1, l_dim), jnp.float32),
        # planar flow params (flow_length=4, dim=1)
        "flow_w": w(ks[4], (FLOW_LENGTH, 1), 0.5),
        "flow_b": w(ks[5], (FLOW_LENGTH, 1), 0.5),
        "flow_u": w(ks[6], (FLOW_LENGTH, 1), 0.5),
        # beta ~ U(0, 100)
        "beta": jax.random.uniform(ks[7], (1, 1), jnp.float32, 0.0, 100.0),
        # classifier head
        "w1": w(ks[8], (l_dim, h_dim)),
        "b1": jnp.zeros((1, h_dim), jnp.float32),
        "w2": w(ks[9], (h_dim, n_classes)),
        "b2": jnp.zeros((1, n_classes), jnp.float32),
    }


if __name__ == "__main__":
    B, N, IN_DIM, L_DIM, H_DIM, N_CLASSES = 4, 16, 8, 32, 32, 4

    key = jax.random.PRNGKey(0)
    kg, kh, klab, kp = jax.random.split(key, 4)

    gs = jax.random.uniform(kg, (B, N, N), jnp.float32, 0.05, 1.0)
    gs = 0.5 * (gs + jnp.transpose(gs, (0, 2, 1)))
    gs = gs + jnp.eye(N, dtype=jnp.float32)[None]          # self-loops, positive degrees
    hs = jax.random.normal(kh, (B, N, IN_DIM), dtype=jnp.float32)
    labels = jax.random.randint(klab, (B,), 0, N_CLASSES)

    params = init_params(kp, IN_DIM, L_DIM, H_DIM, N_CLASSES)
    wpack, scal = pack_params(params, IN_DIM, L_DIM, H_DIM, N_CLASSES)

    flow_forward = build_flow_forward(B, N, IN_DIM, L_DIM, H_DIM, N_CLASSES)
    loss, acc = flow_forward(gs, hs, labels, wpack, scal)
    jax.block_until_ready((loss, acc))
    print("KERNEL_OK")
</pallas_src>

<mosaic_0001>
module attributes {stable_mosaic.version = 11 : i64} {
  func.func @kernel(%arg0: memref<4x16x16xf32, #tpu.memory_space<vmem>>, %arg1: memref<4x16x8xf32, #tpu.memory_space<vmem>>, %arg2: memref<4x1xi32, #tpu.memory_space<vmem>>, %arg3: memref<88x32xf32, #tpu.memory_space<vmem>>, %arg4: memref<16xf32, #tpu.memory_space<smem>>, %arg5: memref<1x2xf32, #tpu.memory_space<smem>>, %arg6: memref<64x64xf32, #tpu.memory_space<vmem>>) attributes {dimension_semantics = [], scalar_prefetch = 0 : i64, scratch_operands = 1 : i64, tpu.core_type = #tpu.core_type<tc>} {
    %cst = arith.constant 0.000000e+00 : f32
    %0 = vector.broadcast %cst : f32 to vector<64x64xf32>
    %c0 = arith.constant 0 : index
    %c0_0 = arith.constant 0 : index
    %1 = vector.load %arg6[%c0, %c0_0] : memref<64x64xf32, #tpu.memory_space<vmem>>, vector<64x64xf32>
    tpu.vector_store %arg6[%c0, %c0_0], %0 {strides = array<i32>} : memref<64x64xf32, #tpu.memory_space<vmem>>, vector<64x64xf32>,
    %c0_1 = arith.constant 0 : index
    %c0_2 = arith.constant 0 : index
    %c0_3 = arith.constant 0 : index
    %2 = vector.load %arg0[%c0_1, %c0_2, %c0_3] : memref<4x16x16xf32, #tpu.memory_space<vmem>>, vector<1x16x16xf32>
    %3 = vector.shape_cast %2 : vector<1x16x16xf32> to vector<16x16xf32>
    %c0_4 = arith.constant 0 : index
    %c0_5 = arith.constant 0 : index
    %4 = vector.load %arg6[%c0_4, %c0_5] : memref<64x64xf32, #tpu.memory_space<vmem>>, vector<16x16xf32>
    tpu.vector_store %arg6[%c0_4, %c0_5], %3 {strides = array<i32>} : memref<64x64xf32, #tpu.memory_space<vmem>>, vector<16x16xf32>,
    %c1 = arith.constant 1 : index
    %c0_6 = arith.constant 0 : index
    %c0_7 = arith.constant 0 : index
    %5 = vector.load %arg0[%c1, %c0_6, %c0_7] : memref<4x16x16xf32, #tpu.memory_space<vmem>>, vector<1x16x16xf32>
    %6 = vector.shape_cast %5 : vector<1x16x16xf32> to vector<16x16xf32>
    %c16 = arith.constant 16 : index
    %c16_8 = arith.constant 16 : index
    %7 = vector.load %arg6[%c16, %c16_8] : memref<64x64xf32, #tpu.memory_space<vmem>>, vector<16x16xf32>
    tpu.vector_store %arg6[%c16, %c16_8], %6 {strides = array<i32>} : memref<64x64xf32, #tpu.memory_space<vmem>>, vector<16x16xf32>,
    %c2 = arith.constant 2 : index
    %c0_9 = arith.constant 0 : index
    %c0_10 = arith.constant 0 : index
    %8 = vector.load %arg0[%c2, %c0_9, %c0_10] : memref<4x16x16xf32, #tpu.memory_space<vmem>>, vector<1x16x16xf32>
    %9 = vector.shape_cast %8 : vector<1x16x16xf32> to vector<16x16xf32>
    %c32 = arith.constant 32 : index
    %c32_11 = arith.constant 32 : index
    %10 = vector.load %arg6[%c32, %c32_11] : memref<64x64xf32, #tpu.memory_space<vmem>>, vector<16x16xf32>
    tpu.vector_store %arg6[%c32, %c32_11], %9 {strides = array<i32>} : memref<64x64xf32, #tpu.memory_space<vmem>>, vector<16x16xf32>,
    %c3 = arith.constant 3 : index
    %c0_12 = arith.constant 0 : index
    %c0_13 = arith.constant 0 : index
    %11 = vector.load %arg0[%c3, %c0_12, %c0_13] : memref<4x16x16xf32, #tpu.memory_space<vmem>>, vector<1x16x16xf32>
    %12 = vector.shape_cast %11 : vector<1x16x16xf32> to vector<16x16xf32>
    %c48 = arith.constant 48 : index
    %c48_14 = arith.constant 48 : index
    %13 = vector.load %arg6[%c48, %c48_14] : memref<64x64xf32, #tpu.memory_space<vmem>>, vector<16x16xf32>
    tpu.vector_store %arg6[%c48, %c48_14], %12 {strides = array<i32>} : memref<64x64xf32, #tpu.memory_space<vmem>>, vector<16x16xf32>,
    %c0_15 = arith.constant 0 : index
    %c0_16 = arith.constant 0 : index
    %14 = vector.load %arg6[%c0_15, %c0_16] : memref<64x64xf32, #tpu.memory_space<vmem>>, vector<64x64xf32>
    %cst_17 = arith.constant dense<0.000000e+00> : vector<64xf32>
    %15 = vector.multi_reduction <add>, %14, %cst_17 [1] : vector<64x64xf32> to vector<64xf32>
    %16 = vector.shape_cast %15 : vector<64xf32> to vector<64x1xf32>
    %cst_18 = arith.constant 1.000000e+00 : f32
    %17 = vector.broadcast %cst_18 : f32 to vector<64x1xf32>
    %18 = arith.divf %17, %16 : vector<64x1xf32>
    %c0_19 = arith.constant 0 : index
    %c0_20 = arith.constant 0 : index
    %c0_21 = arith.constant 0 : index
    %19 = vector.load %arg1[%c0_19, %c0_20, %c0_21] : memref<4x16x8xf32, #tpu.memory_space<vmem>>, vector<4x16x8xf32>
    %20 = vector.shape_cast %19 : vector<4x16x8xf32> to vector<64x8xf32>
    %c0_22 = arith.constant 0 : index
    %c0_23 = arith.constant 0 : index
    %21 = vector.load %arg3[%c0_22, %c0_23] : memref<88x32xf32, #tpu.memory_space<vmem>>, vector<8x32xf32>
    %c16_24 = arith.constant 16 : index
    %c0_25 = arith.constant 0 : index
    %22 = vector.load %arg3[%c16_24, %c0_25] : memref<88x32xf32, #tpu.memory_space<vmem>>, vector<1x32xf32>
    %23 = vector.broadcast %18 : vector<64x1xf32> to vector<64x8xf32>
    %24 = arith.mulf %20, %23 : vector<64x8xf32>
    %cst_26 = arith.constant dense<0.000000e+00> : vector<64x8xf32>
    %25 = tpu.matmul %14, %24, %cst_26 {dimension_numbers = #tpu.dot_dimension_numbers<[1], [0], [0], [1], [0, 0, 1, 1], [], []>} : vector<64x64xf32>, vector<64x8xf32>, vector<64x8xf32> -> vector<64x8xf32>
    %cst_27 = arith.constant dense<0.000000e+00> : vector<64x32xf32>
    %26 = tpu.matmul %25, %21, %cst_27 {dimension_numbers = #tpu.dot_dimension_numbers<[1], [0], [0], [1], [0, 0, 1, 1], [], []>} : vector<64x8xf32>, vector<8x32xf32>, vector<64x32xf32> -> vector<64x32xf32>
    %27 = vector.broadcast %22 : vector<1x32xf32> to vector<64x32xf32>
    %28 = arith.addf %26, %27 : vector<64x32xf32>
    %cst_28 = arith.constant 0.000000e+00 : f32
    %29 = vector.broadcast %cst_28 : f32 to vector<64x32xf32>
    %30 = arith.maximumf %28, %29 : vector<64x32xf32>
    %c8 = arith.constant 8 : index
    %c0_29 = arith.constant 0 : index
    %31 = vector.load %arg3[%c8, %c0_29] : memref<88x32xf32, #tpu.memory_space<vmem>>, vector<2x32xf32>
    %cst_30 = arith.constant dense<0.000000e+00> : vector<64x2xf32>
    %32 = tpu.matmul %30, %31, %cst_30 {dimension_numbers = #tpu.dot_dimension_numbers<[1], [1], [0], [0], [0, 0, 1, 0], [], []>} : vector<64x32xf32>, vector<2x32xf32>, vector<64x2xf32> -> vector<64x2xf32>
    %33 = vector.broadcast %18 : vector<64x1xf32> to vector<64x2xf32>
    %34 = arith.mulf %32, %33 : vector<64x2xf32>
    %cst_31 = arith.constant dense<0.000000e+00> : vector<64x2xf32>
    %35 = tpu.matmul %14, %34, %cst_31 {dimension_numbers = #tpu.dot_dimension_numbers<[1], [0], [0], [1], [0, 0, 1, 1], [], []>} : vector<64x64xf32>, vector<64x2xf32>, vector<64x2xf32> -> vector<64x2xf32>
    %c13 = arith.constant 13 : index
    %36 = memref.load %arg4[%c13] : memref<16xf32, #tpu.memory_space<smem>>
    %c14 = arith.constant 14 : index
    %37 = memref.load %arg4[%c14] : memref<16xf32, #tpu.memory_space<smem>>
    %38 = vector.extract_strided_slice %35 {offsets = [0, 0], sizes = [64, 1], strides = [1, 1]} : vector<64x2xf32> to vector<64x1xf32>
    %39 = vector.broadcast %36 : f32 to vector<64x1xf32>
    %40 = arith.addf %38, %39 : vector<64x1xf32>
    %cst_32 = arith.constant 0.000000e+00 : f32
    %41 = vector.broadcast %cst_32 : f32 to vector<64x1xf32>
    %42 = arith.maximumf %40, %41 : vector<64x1xf32>
    %43 = vector.extract_strided_slice %35 {offsets = [0, 1], sizes = [64, 1], strides = [1, 1]} : vector<64x2xf32> to vector<64x1xf32>
    %44 = vector.broadcast %37 : f32 to vector<64x1xf32>
    %45 = arith.addf %43, %44 : vector<64x1xf32>
    %cst_33 = arith.constant 0.000000e+00 : f32
    %46 = vector.broadcast %cst_33 : f32 to vector<64x1xf32>
    %47 = arith.maximumf %45, %46 : vector<64x1xf32>
    %cst_34 = arith.constant 0.000000e+00 : f32
    %48 = vector.broadcast %cst_34 : f32 to vector<64x1xf32>
    %c0_35 = arith.constant 0 : index
    %49 = memref.load %arg4[%c0_35] : memref<16xf32, #tpu.memory_space<smem>>
    %c4 = arith.constant 4 : index
    %50 = memref.load %arg4[%c4] : memref<16xf32, #tpu.memory_space<smem>>
    %c8_36 = arith.constant 8 : index
    %51 = memref.load %arg4[%c8_36] : memref<16xf32, #tpu.memory_space<smem>>
    %52 = vector.broadcast %49 : f32 to vector<64x1xf32>
    %53 = arith.mulf %42, %52 : vector<64x1xf32>
    %54 = vector.broadcast %50 : f32 to vector<64x1xf32>
    %55 = arith.addf %53, %54 : vector<64x1xf32>
    %56 = math.tanh %55 : vector<64x1xf32>
    %57 = arith.mulf %56, %56 : vector<64x1xf32>
    %cst_37 = arith.constant 1.000000e+00 : f32
    %58 = vector.broadcast %cst_37 : f32 to vector<64x1xf32>
    %59 = arith.subf %58, %57 : vector<64x1xf32>
    %60 = vector.broadcast %49 : f32 to vector<64x1xf32>
    %61 = arith.mulf %59, %60 : vector<64x1xf32>
    %62 = vector.broadcast %51 : f32 to vector<64x1xf32>
    %63 = arith.mulf %61, %62 : vector<64x1xf32>
    %cst_38 = arith.constant 1.000000e+00 : f32
    %64 = vector.broadcast %cst_38 : f32 to vector<64x1xf32>
    %65 = arith.addf %64, %63 : vector<64x1xf32>
    %66 = math.absf %65 : vector<64x1xf32>
    %cst_39 = arith.constant 1.000000e-07 : f32
    %67 = vector.broadcast %cst_39 : f32 to vector<64x1xf32>
    %68 = arith.addf %66, %67 : vector<64x1xf32>
    %69 = math.log %68 : vector<64x1xf32>
    %70 = arith.addf %48, %69 : vector<64x1xf32>
    %71 = vector.broadcast %51 : f32 to vector<64x1xf32>
    %72 = arith.mulf %71, %56 : vector<64x1xf32>
    %73 = arith.addf %42, %72 : vector<64x1xf32>
    %c1_40 = arith.constant 1 : index
    %74 = memref.load %arg4[%c1_40] : memref<16xf32, #tpu.memory_space<smem>>
    %c5 = arith.constant 5 : index
    %75 = memref.load %arg4[%c5] : memref<16xf32, #tpu.memory_space<smem>>
    %c9 = arith.constant 9 : index
    %76 = memref.load %arg4[%c9] : memref<16xf32, #tpu.memory_space<smem>>
    %77 = vector.broadcast %74 : f32 to vector<64x1xf32>
    %78 = arith.mulf %73, %77 : vector<64x1xf32>
    %79 = vector.broadcast %75 : f32 to vector<64x1xf32>
    %80 = arith.addf %78, %79 : vector<64x1xf32>
    %81 = math.tanh %80 : vector<64x1xf32>
    %82 = arith.mulf %81, %81 : vector<64x1xf32>
    %cst_41 = arith.constant 1.000000e+00 : f32
    %83 = vector.broadcast %cst_41 : f32 to vector<64x1xf32>
    %84 = arith.subf %83, %82 : vector<64x1xf32>
    %85 = vector.broadcast %74 : f32 to vector<64x1xf32>
    %86 = arith.mulf %84, %85 : vector<64x1xf32>
    %87 = vector.broadcast %76 : f32 to vector<64x1xf32>
    %88 = arith.mulf %86, %87 : vector<64x1xf32>
    %cst_42 = arith.constant 1.000000e+00 : f32
    %89 = vector.broadcast %cst_42 : f32 to vector<64x1xf32>
    %90 = arith.addf %89, %88 : vector<64x1xf32>
    %91 = math.absf %90 : vector<64x1xf32>
    %cst_43 = arith.constant 1.000000e-07 : f32
    %92 = vector.broadcast %cst_43 : f32 to vector<64x1xf32>
    %93 = arith.addf %91, %92 : vector<64x1xf32>
    %94 = math.log %93 : vector<64x1xf32>
    %95 = arith.addf %70, %94 : vector<64x1xf32>
    %96 = vector.broadcast %76 : f32 to vector<64x1xf32>
    %97 = arith.mulf %96, %81 : vector<64x1xf32>
    %98 = arith.addf %73, %97 : vector<64x1xf32>
    %c2_44 = arith.constant 2 : index
    %99 = memref.load %arg4[%c2_44] : memref<16xf32, #tpu.memory_space<smem>>
    %c6 = arith.constant 6 : index
    %100 = memref.load %arg4[%c6] : memref<16xf32, #tpu.memory_space<smem>>
    %c10 = arith.constant 10 : index
    %101 = memref.load %arg4[%c10] : memref<16xf32, #tpu.memory_space<smem>>
    %102 = vector.broadcast %99 : f32 to vector<64x1xf32>
    %103 = arith.mulf %98, %102 : vector<64x1xf32>
    %104 = vector.broadcast %100 : f32 to vector<64x1xf32>
    %105 = arith.addf %103, %104 : vector<64x1xf32>
    %106 = math.tanh %105 : vector<64x1xf32>
    %107 = arith.mulf %106, %106 : vector<64x1xf32>
    %cst_45 = arith.constant 1.000000e+00 : f32
    %108 = vector.broadcast %cst_45 : f32 to vector<64x1xf32>
    %109 = arith.subf %108, %107 : vector<64x1xf32>
    %110 = vector.broadcast %99 : f32 to vector<64x1xf32>
    %111 = arith.mulf %109, %110 : vector<64x1xf32>
    %112 = vector.broadcast %101 : f32 to vector<64x1xf32>
    %113 = arith.mulf %111, %112 : vector<64x1xf32>
    %cst_46 = arith.constant 1.000000e+00 : f32
    %114 = vector.broadcast %cst_46 : f32 to vector<64x1xf32>
    %115 = arith.addf %114, %113 : vector<64x1xf32>
    %116 = math.absf %115 : vector<64x1xf32>
    %cst_47 = arith.constant 1.000000e-07 : f32
    %117 = vector.broadcast %cst_47 : f32 to vector<64x1xf32>
    %118 = arith.addf %116, %117 : vector<64x1xf32>
    %119 = math.log %118 : vector<64x1xf32>
    %120 = arith.addf %95, %119 : vector<64x1xf32>
    %121 = vector.broadcast %101 : f32 to vector<64x1xf32>
    %122 = arith.mulf %121, %106 : vector<64x1xf32>
    %123 = arith.addf %98, %122 : vector<64x1xf32>
    %c3_48 = arith.constant 3 : index
    %124 = memref.load %arg4[%c3_48] : memref<16xf32, #tpu.memory_space<smem>>
    %c7 = arith.constant 7 : index
    %125 = memref.load %arg4[%c7] : memref<16xf32, #tpu.memory_space<smem>>
    %c11 = arith.constant 11 : index
    %126 = memref.load %arg4[%c11] : memref<16xf32, #tpu.memory_space<smem>>
    %127 = vector.broadcast %124 : f32 to vector<64x1xf32>
    %128 = arith.mulf %123, %127 : vector<64x1xf32>
    %129 = vector.broadcast %125 : f32 to vector<64x1xf32>
    %130 = arith.addf %128, %129 : vector<64x1xf32>
    %131 = math.tanh %130 : vector<64x1xf32>
    %132 = arith.mulf %131, %131 : vector<64x1xf32>
    %cst_49 = arith.constant 1.000000e+00 : f32
    %133 = vector.broadcast %cst_49 : f32 to vector<64x1xf32>
    %134 = arith.subf %133, %132 : vector<64x1xf32>
    %135 = vector.broadcast %124 : f32 to vector<64x1xf32>
    %136 = arith.mulf %134, %135 : vector<64x1xf32>
    %137 = vector.broadcast %126 : f32 to vector<64x1xf32>
    %138 = arith.mulf %136, %137 : vector<64x1xf32>
    %cst_50 = arith.constant 1.000000e+00 : f32
    %139 = vector.broadcast %cst_50 : f32 to vector<64x1xf32>
    %140 = arith.addf %139, %138 : vector<64x1xf32>
    %141 = math.absf %140 : vector<64x1xf32>
    %cst_51 = arith.constant 1.000000e-07 : f32
    %142 = vector.broadcast %cst_51 : f32 to vector<64x1xf32>
    %143 = arith.addf %141, %142 : vector<64x1xf32>
    %144 = math.log %143 : vector<64x1xf32>
    %145 = arith.addf %120, %144 : vector<64x1xf32>
    %146 = vector.broadcast %126 : f32 to vector<64x1xf32>
    %147 = arith.mulf %146, %131 : vector<64x1xf32>
    %148 = arith.addf %123, %147 : vector<64x1xf32>
    %cst_52 = arith.constant 5.000000e-01 : f32
    %149 = vector.broadcast %cst_52 : f32 to vector<64x1xf32>
    %150 = arith.mulf %149, %47 : vector<64x1xf32>
    %151 = math.exp %150 : vector<64x1xf32>
    %152 = arith.subf %42, %42 : vector<64x1xf32>
    %153 = arith.divf %152, %151 : vector<64x1xf32>
    %154 = arith.mulf %153, %153 : vector<64x1xf32>
    %cst_53 = arith.constant -5.000000e-01 : f32
    %155 = vector.broadcast %cst_53 : f32 to vector<64x1xf32>
    %156 = arith.mulf %155, %154 : vector<64x1xf32>
    %cst_54 = arith.constant 2.500000e+00 : f32
    %157 = vector.broadcast %cst_54 : f32 to vector<64x1xf32>
    %158 = arith.mulf %157, %151 : vector<64x1xf32>
    %159 = math.log %158 : vector<64x1xf32>
    %160 = arith.subf %156, %159 : vector<64x1xf32>
    %cst_55 = arith.constant 0.000000e+00 : f32
    %161 = vector.broadcast %cst_55 : f32 to vector<64x1xf32>
    %162 = arith.subf %148, %161 : vector<64x1xf32>
    %cst_56 = arith.constant 1.000000e+00 : f32
    %163 = vector.broadcast %cst_56 : f32 to vector<64x1xf32>
    %164 = arith.divf %162, %163 : vector<64x1xf32>
    %165 = arith.mulf %164, %164 : vector<64x1xf32>
    %cst_57 = arith.constant -5.000000e-01 : f32
    %166 = vector.broadcast %cst_57 : f32 to vector<64x1xf32>
    %167 = arith.mulf %166, %165 : vector<64x1xf32>
    %cst_58 = arith.constant 2.500000e+00 : f32
    %168 = math.log %cst_58 : f32
    %169 = vector.broadcast %168 : f32 to vector<64x1xf32>
    %170 = arith.subf %167, %169 : vector<64x1xf32>
    %171 = arith.subf %160, %145 : vector<64x1xf32>
    %172 = arith.subf %171, %170 : vector<64x1xf32>
    %173 = vector.shape_cast %172 : vector<64x1xf32> to vector<1x64x1xf32>
    %cst_59 = arith.constant dense<0.000000e+00> : vector<1xf32>
    %174 = vector.multi_reduction <add>, %173, %cst_59 [1, 2] : vector<1x64x1xf32> to vector<1xf32>
    %175 = vector.shape_cast %174 : vector<1xf32> to vector<1x1x1xf32>
    %176 = vector.extract %175[0, 0, 0] : f32 from vector<1x1x1xf32>
    %cst_60 = arith.constant 6.400000e+01 : f32
    %177 = arith.divf %176, %cst_60 : f32
    %c12 = arith.constant 12 : index
    %178 = memref.load %arg4[%c12] : memref<16xf32, #tpu.memory_space<smem>>
    %179 = vector.broadcast %178 : f32 to vector<64x1xf32>
    %180 = arith.mulf %179, %148 : vector<64x1xf32>
    %181 = arith.negf %180 : vector<64x1xf32>
    %182 = math.exp %181 : vector<64x1xf32>
    %cst_61 = arith.constant 1.000000e+00 : f32
    %183 = vector.broadcast %cst_61 : f32 to vector<64x1xf32>
    %184 = arith.addf %183, %182 : vector<64x1xf32>
    %185 = arith.divf %183, %184 : vector<64x1xf32>
    %c17 = arith.constant 17 : index
    %c0_62 = arith.constant 0 : index
    %186 = vector.load %arg3[%c17, %c0_62] : memref<88x32xf32, #tpu.memory_space<vmem>>, vector<1x32xf32>
    %c18 = arith.constant 18 : index
    %c0_63 = arith.constant 0 : index
    %187 = vector.load %arg3[%c18, %c0_63] : memref<88x32xf32, #tpu.memory_space<vmem>>, vector<1x32xf32>
    %188 = arith.mulf %185, %18 : vector<64x1xf32>
    %cst_64 = arith.constant dense<0.000000e+00> : vector<64x1xf32>
    %189 = tpu.matmul %14, %188, %cst_64 {dimension_numbers = #tpu.dot_dimension_numbers<[1], [0], [0], [1], [0, 0, 1, 1], [], []>} : vector<64x64xf32>, vector<64x1xf32>, vector<64x1xf32> -> vector<64x1xf32>
    %190 = vector.broadcast %189 : vector<64x1xf32> to vector<64x32xf32>
    %191 = vector.broadcast %186 : vector<1x32xf32> to vector<64x32xf32>
    %192 = arith.mulf %190, %191 : vector<64x32xf32>
    %193 = vector.broadcast %187 : vector<1x32xf32> to vector<64x32xf32>
    %194 = arith.addf %192, %193 : vector<64x32xf32>
    %cst_65 = arith.constant 0.000000e+00 : f32
    %195 = vector.broadcast %cst_65 : f32 to vector<64x32xf32>
    %196 = arith.maximumf %194, %195 : vector<64x32xf32>
    %197 = arith.subf %30, %196 : vector<64x32xf32>
    %198 = arith.mulf %197, %197 : vector<64x32xf32>
    %199 = vector.shape_cast %198 : vector<64x32xf32> to vector<1x64x32xf32>
    %cst_66 = arith.constant dense<0.000000e+00> : vector<1xf32>
    %200 = vector.multi_reduction <add>, %199, %cst_66 [1, 2] : vector<1x64x32xf32> to vector<1xf32>
    %201 = vector.shape_cast %200 : vector<1xf32> to vector<1x1x1xf32>
    %202 = vector.extract %201[0, 0, 0] : f32 from vector<1x1x1xf32>
    %cst_67 = arith.constant 2.048000e+03 : f32
    %203 = arith.divf %202, %cst_67 : f32
    %204 = vector.broadcast %185 : vector<64x1xf32> to vector<64x32xf32>
    %205 = arith.mulf %30, %204 : vector<64x32xf32>
    %206 = vector.shape_cast %205 : vector<64x32xf32> to vector<4x16x32xf32>
    %cst_68 = arith.constant dense<0.000000e+00> : vector<4x32xf32>
    %207 = vector.multi_reduction <add>, %206, %cst_68 [1] : vector<4x16x32xf32> to vector<4x32xf32>
    %c24 = arith.constant 24 : index
    %c0_69 = arith.constant 0 : index
    %208 = vector.load %arg3[%c24, %c0_69] : memref<88x32xf32, #tpu.memory_space<vmem>>, vector<32x32xf32>
    %c19 = arith.constant 19 : index
    %c0_70 = arith.constant 0 : index
    %209 = vector.load %arg3[%c19, %c0_70] : memref<88x32xf32, #tpu.memory_space<vmem>>, vector<1x32xf32>
    %c56 = arith.constant 56 : index
    %c0_71 = arith.constant 0 : index
    %210 = vector.load %arg3[%c56, %c0_71] : memref<88x32xf32, #tpu.memory_space<vmem>>, vector<32x4xf32>
    %c20 = arith.constant 20 : index
    %c0_72 = arith.constant 0 : index
    %211 = vector.load %arg3[%c20, %c0_72] : memref<88x32xf32, #tpu.memory_space<vmem>>, vector<1x4xf32>
    %cst_73 = arith.constant dense<0.000000e+00> : vector<4x32xf32>
    %212 = tpu.matmul %207, %208, %cst_73 {dimension_numbers = #tpu.dot_dimension_numbers<[1], [0], [0], [1], [0, 0, 1, 1], [], []>} : vector<4x32xf32>, vector<32x32xf32>, vector<4x32xf32> -> vector<4x32xf32>
    %213 = vector.broadcast %209 : vector<1x32xf32> to vector<4x32xf32>
    %214 = arith.addf %212, %213 : vector<4x32xf32>
    %cst_74 = arith.constant 0.000000e+00 : f32
    %215 = vector.broadcast %cst_74 : f32 to vector<4x32xf32>
    %216 = arith.maximumf %214, %215 : vector<4x32xf32>
    %cst_75 = arith.constant dense<0.000000e+00> : vector<4x4xf32>
    %217 = tpu.matmul %216, %210, %cst_75 {dimension_numbers = #tpu.dot_dimension_numbers<[1], [0], [0], [1], [0, 0, 1, 1], [], []>} : vector<4x32xf32>, vector<32x4xf32>, vector<4x4xf32> -> vector<4x4xf32>
    %218 = vector.broadcast %211 : vector<1x4xf32> to vector<4x4xf32>
    %219 = arith.addf %217, %218 : vector<4x4xf32>
    %cst_76 = arith.constant dense<0xFF800000> : vector<4xf32>
    %220 = vector.multi_reduction <maximumf>, %219, %cst_76 [1] : vector<4x4xf32> to vector<4xf32>
    %221 = vector.shape_cast %220 : vector<4xf32> to vector<4x1xf32>
    %222 = vector.broadcast %221 : vector<4x1xf32> to vector<4x4xf32>
    %223 = arith.subf %219, %222 : vector<4x4xf32>
    %224 = math.exp %223 : vector<4x4xf32>
    %cst_77 = arith.constant dense<0.000000e+00> : vector<4xf32>
    %225 = vector.multi_reduction <add>, %224, %cst_77 [1] : vector<4x4xf32> to vector<4xf32>
    %226 = vector.shape_cast %225 : vector<4xf32> to vector<4x1xf32>
    %227 = math.log %226 : vector<4x1xf32>
    %228 = arith.addf %221, %227 : vector<4x1xf32>
    %229 = vector.broadcast %228 : vector<4x1xf32> to vector<4x4xf32>
    %230 = arith.subf %219, %229 : vector<4x4xf32>
    %231 = tpu.iota {dimensions = array<i32: 1>} : vector<4x4xi32>
    %c0_78 = arith.constant 0 : index
    %c0_79 = arith.constant 0 : index
    %232 = vector.load %arg2[%c0_78, %c0_79] : memref<4x1xi32, #tpu.memory_space<vmem>>, vector<4x1xi32>
    %233 = vector.broadcast %232 : vector<4x1xi32> to vector<4x4xi32>
    %234 = arith.cmpi eq, %231, %233 : vector<4x4xi32>
    %235 = arith.extui %234 : vector<4x4xi1> to vector<4x4xi32>
    %236 = arith.sitofp %235 : vector<4x4xi32> to vector<4x4xf32>
    %237 = arith.mulf %236, %230 : vector<4x4xf32>
    %238 = vector.shape_cast %237 : vector<4x4xf32> to vector<1x4x4xf32>
    %cst_80 = arith.constant dense<0.000000e+00> : vector<1xf32>
    %239 = vector.multi_reduction <add>, %238, %cst_80 [1, 2] : vector<1x4x4xf32> to vector<1xf32>
    %240 = vector.shape_cast %239 : vector<1xf32> to vector<1x1x1xf32>
    %241 = vector.extract %240[0, 0, 0] : f32 from vector<1x1x1xf32>
    %cst_81 = arith.constant 0.000000e+00 : f32
    %242 = arith.subf %cst_81, %241 : f32
    %cst_82 = arith.constant 4.000000e+00 : f32
    %243 = arith.divf %242, %cst_82 : f32
    %cst_83 = arith.constant dense<0xFF800000> : vector<4xf32>
    %244 = vector.multi_reduction <maximumf>, %230, %cst_83 [1] : vector<4x4xf32> to vector<4xf32>
    %245 = vector.shape_cast %244 : vector<4xf32> to vector<4x1xf32>
    %246 = vector.broadcast %245 : vector<4x1xf32> to vector<4x4xf32>
    %247 = arith.cmpf oge, %230, %246 : vector<4x4xf32>
    %c4_i32 = arith.constant 4 : i32
    %248 = vector.broadcast %c4_i32 : i32 to vector<4x4xi32>
    %249 = arith.select %247, %231, %248 : vector<4x4xi1>, vector<4x4xi32>
    %cst_84 = arith.constant dense<2147483647> : vector<4xi32>
    %250 = vector.multi_reduction <minsi>, %249, %cst_84 [1] : vector<4x4xi32> to vector<4xi32>
    %251 = vector.shape_cast %250 : vector<4xi32> to vector<4x1xi32>
    %252 = arith.cmpi eq, %251, %232 : vector<4x1xi32>
    %253 = arith.extui %252 : vector<4x1xi1> to vector<4x1xi32>
    %254 = arith.sitofp %253 : vector<4x1xi32> to vector<4x1xf32>
    %255 = vector.shape_cast %254 : vector<4x1xf32> to vector<1x4x1xf32>
    %cst_85 = arith.constant dense<0.000000e+00> : vector<1xf32>
    %256 = vector.multi_reduction <add>, %255, %cst_85 [1, 2] : vector<1x4x1xf32> to vector<1xf32>
    %257 = vector.shape_cast %256 : vector<1xf32> to vector<1x1x1xf32>
    %258 = vector.extract %257[0, 0, 0] : f32 from vector<1x1x1xf32>
    %cst_86 = arith.constant 4.000000e+00 : f32
    %259 = arith.divf %258, %cst_86 : f32
    %260 = arith.addf %243, %203 : f32
    %261 = arith.addf %260, %177 : f32
    %c0_87 = arith.constant 0 : index
    %c0_88 = arith.constant 0 : index
    %262 = memref.load %arg5[%c0_87, %c0_88] : memref<1x2xf32, #tpu.memory_space<smem>>
    memref.store %261, %arg5[%c0_87, %c0_88] : memref<1x2xf32, #tpu.memory_space<smem>>
    %c0_89 = arith.constant 0 : index
    %c1_90 = arith.constant 1 : index
    %263 = memref.load %arg5[%c0_89, %c1_90] : memref<1x2xf32, #tpu.memory_space<smem>>
    memref.store %259, %arg5[%c0_89, %c1_90] : memref<1x2xf32, #tpu.memory_space<smem>>
    return
  }
}

</mosaic_0001>

<llo_original>
// kernel: fwd.1
$region0: #{fwd.1}
  #allocation0 [shape = 'u32[]', space=smem, size = 0x4, offset = 0x4, fixed_abs, tag = 'smem constant byte address 0x4 - core index']
  #allocation1 [shape = 'u32[144,128]{1,0:T(1,128)}', space=vmem, size = 0x12000, scoped, tag = 'internal scratch']
  #allocation2 [shape = 'f32[64,64]{1,0:T(8,128)}', space=vmem, size = 0x8000, scoped, tag = 'scratch operand']
  %s0 = inlined_call_operand.vmem [shape: f32[4,16,16], index: 0, kind: input, shape index: {}]
  %s1 = inlined_call_operand.vmem [shape: f32[4,16,8], index: 1, kind: input, shape index: {}]
  %s2 = inlined_call_operand.vmem [shape: s32[4,1], index: 2, kind: input, shape index: {}]
  %s3 = inlined_call_operand.vmem [shape: f32[88,32], index: 3, kind: input, shape index: {}]
  %s4 = inlined_call_operand.vmem [shape: f32[16], index: 4, kind: input, shape index: {}]
  %s5 = inlined_call_operand.vmem [shape: f32[1,2], index: 5, kind: output, shape index: {}]
  %s6 = sld [smem:[#allocation0]]
  $region34: #{fwd.1} parent=0
    _
  %s8 = ssub.s32 1, %s6
  %s9 = scalar_select 0, %s8, %s6
  $region1: #{fwd.1} parent=0
    #allocation3 [shape = 'u8[512]{0}', space=smem, size = 0x200, scoped, tag = 'input window, operand 4, single buffered']
    #allocation4 [shape = 's32[1]{0}', space=sflag, size = 0x4, scoped, tag = 'scoped memory for fwd.1']
    #allocation5 [shape = 's32[1]{0}', space=sflag, size = 0x4, scoped, tag = 'scoped memory for fwd.1']
    #allocation6 [shape = 'u8[512]{0}', space=smem, size = 0x200, scoped, tag = 'output window, operand 0, single buffered']
    %10 = vsyncpa [#allocation4], 0
    %11 = vsyncpa [#allocation5], 0
    // Predicated region
    $region2: #{fwd.1} parent=1 // pred_check
      _
    $region3: #{fwd.1} parent=1 // pred_check_branch
      %13 = sbr.rel (0) target = $region5
    $region4: #{fwd.1} parent=1 // pred_region
      _
    $region5: #{fwd.1} parent=1 // pred_fallthru
      _
    // Predicated region
    $region6: #{fwd.1} parent=1 // pred_check
      _
    $region7: #{fwd.1} parent=1 // pred_check_branch
      %15 = sbr.rel (0) target = $region9
    $region8: #{fwd.1} parent=1 // pred_region
      _
    $region9: #{fwd.1} parent=1 // pred_fallthru
      _
    // Predicated region
    $region10: #{fwd.1} parent=1 // pred_check
      _
    $region11: #{fwd.1} parent=1 // pred_check_branch
      %17 = sbr.rel (0) target = $region13
    $region12: #{fwd.1} parent=1 // pred_region
      _
    $region13: #{fwd.1} parent=1 // pred_fallthru
      _
    // Predicated region
    $region14: #{fwd.1} parent=1 // pred_check
      _
    $region15: #{fwd.1} parent=1 // pred_check_branch
      %19 = sbr.rel (0) target = $region17
    $region16: #{fwd.1} parent=1 // pred_region
      _
    $region17: #{fwd.1} parent=1 // pred_fallthru
      _
    // Predicated region
    $region18: #{fwd.1} parent=1 // pred_check
      _
    $region19: #{fwd.1} parent=1 // pred_check_branch
      %21 = sbr.rel (0) target = $region21
    $region20: #{fwd.1} parent=1 // pred_region
      %s23 = ssub.s32 16, 16
      %24 = vsyncadd [#allocation4], %s23
      %s26 = sshll.u32 %s4, 4
      %s27 = int_to_ptr.vmem [resolvable:$true] %s26
      %29 = dma.vmem_to_smem %s27, 16, [#allocation3], [#allocation4]
    $region21: #{fwd.1} parent=1 // pred_fallthru
      _
    // Predicated region
    $region22: #{fwd.1} parent=1 // pred_check
      _
    $region23: #{fwd.1} parent=1 // pred_check_branch
      %31 = sbr.rel (0) target = $region25
    $region24: #{fwd.1} parent=1 // pred_region
      %32 = dma.done [#allocation4], 16
    $region25: #{fwd.1} parent=1 // pred_fallthru
      _
    %33 = sfence
    %vm34 = vcmask 523264
    %35 = vst.msk [vmem:[#allocation2] sm:$0xff] %vm34, 0.0
    %36 = vst.msk [vmem:[#allocation2 + $0x8] sm:$0xff] %vm34, 0.0
    %37 = vst.msk [vmem:[#allocation2 + $0x10] sm:$0xff] %vm34, 0.0
    %38 = vst.msk [vmem:[#allocation2 + $0x18] sm:$0xff] %vm34, 0.0
    %39 = vst.msk [vmem:[#allocation2 + $0x20] sm:$0xff] %vm34, 0.0
    %40 = vst.msk [vmem:[#allocation2 + $0x28] sm:$0xff] %vm34, 0.0
    %41 = vst.msk [vmem:[#allocation2 + $0x30] sm:$0xff] %vm34, 0.0
    %42 = vst.msk [vmem:[#allocation2 + $0x38] sm:$0xff] %vm34, 0.0
    %v43 = vld [vmem:[%s0] sm:$0xff]
    %v44 = vld [vmem:[%s0 + $0x8] sm:$0xff]
    %vm45 = vcmask 130048
    %46 = vst.msk [vmem:[#allocation2] sm:$0xff] %vm45, %v43
    %47 = vst.msk [vmem:[#allocation2 + $0x8] sm:$0xff] %vm45, %v44
    %s48 = scalar_lea.vmem %s0, 16
    %v49 = vld [vmem:[%s48] sm:$0xff]
    %v50 = vld [vmem:[%s48 + $0x8] sm:$0xff]
    %53 = vrot.lane.b32.xlu0 %v49, 16
    %v54 = vpop.permute.xlu0 %53
    %55 = vrot.lane.b32.xlu0 %v50, 16
    %v56 = vpop.permute.xlu0 %55
    %vm59 = vcmask 261248
    %60 = vst.msk [vmem:[#allocation2 + $0x10] sm:$0xff] %vm59, %v54
    %61 = vst.msk [vmem:[#allocation2 + $0x18] sm:$0xff] %vm59, %v56
    %s62 = scalar_lea.vmem %s0, 32
    %v63 = vld [vmem:[%s62] sm:$0xff]
    %v64 = vld [vmem:[%s62 + $0x8] sm:$0xff]
    %67 = vrot.lane.b32.xlu0 %v63, 32
    %v68 = vpop.permute.xlu0 %67
    %69 = vrot.lane.b32.xlu0 %v64, 32
    %v70 = vpop.permute.xlu0 %69
    %vm73 = vcmask 392448
    %74 = vst.msk [vmem:[#allocation2 + $0x20] sm:$0xff] %vm73, %v68
    %75 = vst.msk [vmem:[#allocation2 + $0x28] sm:$0xff] %vm73, %v70
    %s76 = scalar_lea.vmem %s0, 48
    %v77 = vld [vmem:[%s76] sm:$0xff]
    %v78 = vld [vmem:[%s76 + $0x8] sm:$0xff]
    %81 = vrot.lane.b32.xlu0 %v77, 48
    %v82 = vpop.permute.xlu0 %81
    %83 = vrot.lane.b32.xlu0 %v78, 48
    %v84 = vpop.permute.xlu0 %83
    %vm87 = vcmask 523648
    %88 = vst.msk [vmem:[#allocation2 + $0x30] sm:$0xff] %vm87, %v82
    %89 = vst.msk [vmem:[#allocation2 + $0x38] sm:$0xff] %vm87, %v84
    %v90 = vld [vmem:[#allocation2] sm:$0xff]
    %v91 = vld [vmem:[#allocation2 + $0x8] sm:$0xff]
    %v92 = vld [vmem:[#allocation2 + $0x10] sm:$0xff]
    %v93 = vld [vmem:[#allocation2 + $0x18] sm:$0xff]
    %v94 = vld [vmem:[#allocation2 + $0x20] sm:$0xff]
    %v95 = vld [vmem:[#allocation2 + $0x28] sm:$0xff]
    %v96 = vld [vmem:[#allocation2 + $0x30] sm:$0xff]
    %v97 = vld [vmem:[#allocation2 + $0x38] sm:$0xff]
    %v98 = vsel %vm34, %v90, 0.0
    %99 = vadd.xlane.f32.xlu0 %v98
    %v100 = vpop.xlane.xlu0 %99
    %v101 = vsel %vm34, %v91, 0.0
    %102 = vadd.xlane.f32.xlu0 %v101
    %v103 = vpop.xlane.xlu0 %102
    %v104 = vsel %vm34, %v92, 0.0
    %105 = vadd.xlane.f32.xlu0 %v104
    %v106 = vpop.xlane.xlu0 %105
    %v107 = vsel %vm34, %v93, 0.0
    %108 = vadd.xlane.f32.xlu0 %v107
    %v109 = vpop.xlane.xlu0 %108
    %v110 = vsel %vm34, %v94, 0.0
    %111 = vadd.xlane.f32.xlu0 %v110
    %v112 = vpop.xlane.xlu0 %111
    %v113 = vsel %vm34, %v95, 0.0
    %114 = vadd.xlane.f32.xlu0 %v113
    %v115 = vpop.xlane.xlu0 %114
    %v116 = vsel %vm34, %v96, 0.0
    %117 = vadd.xlane.f32.xlu0 %v116
    %v118 = vpop.xlane.xlu0 %117
    %v119 = vsel %vm34, %v97, 0.0
    %120 = vadd.xlane.f32.xlu0 %v119
    %v121 = vpop.xlane.xlu0 %120
    %v122 = vrcp.pop %v100
    %v123 = vmul.f32 1.0, %v122
    %v124 = vrcp.pop %v103
    %v125 = vmul.f32 1.0, %v124
    %v126 = vrcp.pop %v106
    %v127 = vmul.f32 1.0, %v126
    %v128 = vrcp.pop %v109
    %v129 = vmul.f32 1.0, %v128
    %v130 = vrcp.pop %v112
    %v131 = vmul.f32 1.0, %v130
    %v132 = vrcp.pop %v115
    %v133 = vmul.f32 1.0, %v132
    %v134 = vrcp.pop %v118
    %v135 = vmul.f32 1.0, %v134
    %v136 = vrcp.pop %v121
    %v137 = vmul.f32 1.0, %v136
    %v138 = vld [vmem:[%s1] sm:$0xff]
    %v139 = vld [vmem:[%s1 + $0x8] sm:$0xff]
    %v140 = vld [vmem:[%s1 + $0x10] sm:$0xff]
    %v141 = vld [vmem:[%s1 + $0x18] sm:$0xff]
    %v142 = vld [vmem:[%s1 + $0x20] sm:$0xff]
    %v143 = vld [vmem:[%s1 + $0x28] sm:$0xff]
    %v144 = vld [vmem:[%s1 + $0x30] sm:$0xff]
    %v145 = vld [vmem:[%s1 + $0x38] sm:$0xff]
    %v146 = vld [vmem:[%s3] sm:$0xff]
    %v147 = vld [vmem:[%s3 + $0x10] sm:$0x1]
    %v148 = vmul.f32 %v138, %v123
    %v149 = vmul.f32 %v139, %v125
    %v150 = vmul.f32 %v140, %v127
    %v151 = vmul.f32 %v141, %v129
    %v152 = vmul.f32 %v142, %v131
    %v153 = vmul.f32 %v143, %v133
    %v154 = vmul.f32 %v144, %v135
    %v155 = vmul.f32 %v145, %v137
    %v157 = vsel %vm34, %v90, 0
    %v160 = vsel %vm34, %v91, 0
    %v163 = vsel %vm34, %v92, 0
    %v166 = vsel %vm34, %v93, 0
    %v169 = vsel %vm34, %v94, 0
    %v172 = vsel %vm34, %v95, 0
    %v175 = vsel %vm34, %v96, 0
    %v178 = vsel %vm34, %v97, 0
    %180 = vmatprep.subr.mxu0 0.0
    %181 = vmatpush1.msra.mxu0 %v148
    %182 = vmatprep.subr.mxu0 0.0
    %183 = vmatpush1.msra.mxu0 %v149
    %184 = vmatprep.subr.mxu0 0.0
    %185 = vmatpush1.msra.mxu0 %v150
    %186 = vmatprep.subr.mxu0 0.0
    %187 = vmatpush1.msra.mxu0 %v151
    %188 = vmatprep.subr.mxu0 0.0
    %189 = vmatpush1.msra.mxu0 %v152
    %190 = vmatprep.subr.mxu0 0.0
    %191 = vmatpush1.msra.mxu0 %v153
    %192 = vmatprep.subr.mxu0 0.0
    %193 = vmatpush1.msra.mxu0 %v154
    %194 = vmatprep.subr.mxu0 0.0
    %195 = vmatpush1.msra.mxu0 %v155
    %196 = vmatprep.subr.mxu0 0.0
    %197 = vmatpush1.msra.mxu0 0.0
    %198 = vmatprep.subr.mxu0 0.0
    %199 = vmatpush1.msra.mxu0 0.0
    %200 = vmatprep.subr.mxu0 0.0
    %201 = vmatpush1.msra.mxu0 0.0
    %202 = vmatprep.subr.mxu0 0.0
    %203 = vmatpush1.msra.mxu0 0.0
    %204 = vmatprep.subr.mxu0 0.0
    %205 = vmatpush1.msra.mxu0 0.0
    %206 = vmatprep.subr.mxu0 0.0
    %207 = vmatpush1.msra.mxu0 0.0
    %208 = vmatprep.subr.mxu0 0.0
    %209 = vmatpush1.msra.mxu0 0.0
    %210 = vmatprep.subr.mxu0 0.0
    %211 = vmatpush1.msra.mxu0 0.0
    %212 = vmatprep.subr.mxu0 0.0
    %213 = vmatpush1.msra.mxu0 0.0
    %214 = vmatprep.subr.mxu0 0.0
    %215 = vmatpush1.msra.mxu0 0.0
    %216 = vmatprep.subr.mxu0 0.0
    %217 = vmatpush1.msra.mxu0 0.0
    %218 = vmatprep.subr.mxu0 0.0
    %219 = vmatpush1.msra.mxu0 0.0
    %220 = vmatprep.subr.mxu0 0.0
    %221 = vmatpush1.msra.mxu0 0.0
    %222 = vmatprep.subr.mxu0 0.0
    %223 = vmatpush1.msra.mxu0 0.0
    %224 = vmatprep.subr.mxu0 0.0
    %225 = vmatpush1.msra.mxu0 0.0
    %226 = vmatprep.subr.mxu0 0.0
    %227 = vmatpush1.msra.mxu0 0.0
    %228 = vmatprep.subr.mxu0 0.0
    %229 = vmatpush1.msra.mxu0 0.0
    %230 = vmatprep.subr.mxu0 0.0
    %231 = vmatpush1.msra.mxu0 0.0
    %232 = vmatprep.subr.mxu0 0.0
    %233 = vmatpush1.msra.mxu0 0.0
    %234 = vmatprep.subr.mxu0 0.0
    %235 = vmatpush1.msra.mxu0 0.0
    %236 = vmatprep.subr.mxu0 0.0
    %237 = vmatpush1.msra.mxu0 0.0
    %238 = vmatprep.subr.mxu0 0.0
    %239 = vmatpush1.msra.mxu0 0.0
    %240 = vmatprep.subr.mxu0 0.0
    %241 = vmatpush1.msra.mxu0 0.0
    %242 = vmatprep.subr.mxu0 0.0
    %243 = vmatpush1.msra.mxu0 0.0
    %244 = vmatprep.mubr.f32.mxu0 0.0
    %245 = vmatmul.mubr.f32.gmra.mrb[0].mxu0 %v157
    %v246 = vpop.f32.mrb[0].mxu0
    %v247 = vadd.f32 0.0, %v246
    %v248 = vpop.f32.mrb[0].mxu0
    %249 = vmatprep.mubr.f32.mxu0 0.0
    %250 = vmatmul.mubr.f32.gmra.mrb[0].mxu0 %v160
    %v251 = vpop.f32.mrb[0].mxu0
    %v252 = vadd.f32 0.0, %v251
    %v253 = vpop.f32.mrb[0].mxu0
    %254 = vmatprep.mubr.f32.mxu0 0.0
    %255 = vmatmul.mubr.f32.gmra.mrb[0].mxu0 %v163
    %v256 = vpop.f32.mrb[0].mxu0
    %v257 = vadd.f32 0.0, %v256
    %v258 = vpop.f32.mrb[0].mxu0
    %259 = vmatprep.mubr.f32.mxu0 0.0
    %260 = vmatmul.mubr.f32.gmra.mrb[0].mxu0 %v166
    %v261 = vpop.f32.mrb[0].mxu0
    %v262 = vadd.f32 0.0, %v261
    %v263 = vpop.f32.mrb[0].mxu0
    %264 = vmatprep.mubr.f32.mxu0 0.0
    %265 = vmatmul.mubr.f32.gmra.mrb[0].mxu0 %v169
    %v266 = vpop.f32.mrb[0].mxu0
    %v267 = vadd.f32 0.0, %v266
    %v268 = vpop.f32.mrb[0].mxu0
    %269 = vmatprep.mubr.f32.mxu0 0.0
    %270 = vmatmul.mubr.f32.gmra.mrb[0].mxu0 %v172
    %v271 = vpop.f32.mrb[0].mxu0
    %v272 = vadd.f32 0.0, %v271
    %v273 = vpop.f32.mrb[0].mxu0
    %274 = vmatprep.mubr.f32.mxu0 0.0
    %275 = vmatmul.mubr.f32.gmra.mrb[0].mxu0 %v175
    %v276 = vpop.f32.mrb[0].mxu0
    %v277 = vadd.f32 0.0, %v276
    %v278 = vpop.f32.mrb[0].mxu0
    %279 = vmatprep.mubr.f32.mxu0 0.0
    %280 = vmatmul.mubr.f32.gmra.mrb[0].mxu0 %v178
    %v281 = vpop.f32.mrb[0].mxu0
    %v282 = vadd.f32 0.0, %v281
    %v283 = vpop.f32.mrb[0].mxu0
    %284 = vdwg.mxu0
    %v285 = vlaneseq
    %v286 = vshrl.u32 %v285, 7
    %v287 = vsub.s32 0, %v286
    %v288 = vrot.slane %v147, %v287
    %vm289 = vcmask 64512
    %v291 = vsel %vm289, %v247, 0
    %v294 = vsel %vm289, %v252, 0
    %v297 = vsel %vm289, %v257, 0
    %v300 = vsel %vm289, %v262, 0
    %v303 = vsel %vm289, %v267, 0
    %v306 = vsel %vm289, %v272, 0
    %v309 = vsel %vm289, %v277, 0
    %v312 = vsel %vm289, %v282, 0
    %314 = vmatprep.subr.mxu0 0.0
    %315 = vmatpush1.msra.mxu0 %v146
    %316 = vmatprep.subr.mxu0 0.0
    %317 = vmatpush1.msra.mxu0 0.0
    %318 = vmatprep.subr.mxu0 0.0
    %319 = vmatpush1.msra.mxu0 0.0
    %320 = vmatprep.subr.mxu0 0.0
    %321 = vmatpush1.msra.mxu0 0.0
    %322 = vmatprep.subr.mxu0 0.0
    %323 = vmatpush1.msra.mxu0 0.0
    %324 = vmatprep.subr.mxu0 0.0
    %325 = vmatpush1.msra.mxu0 0.0
    %326 = vmatprep.subr.mxu0 0.0
    %327 = vmatpush1.msra.mxu0 0.0
    %328 = vmatprep.subr.mxu0 0.0
    %329 = vmatpush1.msra.mxu0 0.0
    %330 = vmatprep.subr.mxu0 0.0
    %331 = vmatpush1.msra.mxu0 0.0
    %332 = vmatprep.subr.mxu0 0.0
    %333 = vmatpush1.msra.mxu0 0.0
    %334 = vmatprep.subr.mxu0 0.0
    %335 = vmatpush1.msra.mxu0 0.0
    %336 = vmatprep.subr.mxu0 0.0
    %337 = vmatpush1.msra.mxu0 0.0
    %338 = vmatprep.subr.mxu0 0.0
    %339 = vmatpush1.msra.mxu0 0.0
    %340 = vmatprep.subr.mxu0 0.0
    %341 = vmatpush1.msra.mxu0 0.0
    %342 = vmatprep.subr.mxu0 0.0
    %343 = vmatpush1.msra.mxu0 0.0
    %344 = vmatprep.subr.mxu0 0.0
    %345 = vmatpush1.msra.mxu0 0.0
    %346 = vmatprep.subr.mxu0 0.0
    %347 = vmatpush1.msra.mxu0 0.0
    %348 = vmatprep.subr.mxu0 0.0
    %349 = vmatpush1.msra.mxu0 0.0
    %350 = vmatprep.subr.mxu0 0.0
    %351 = vmatpush1.msra.mxu0 0.0
    %352 = vmatprep.subr.mxu0 0.0
    %353 = vmatpush1.msra.mxu0 0.0
    %354 = vmatprep.subr.mxu0 0.0
    %355 = vmatpush1.msra.mxu0 0.0
    %356 = vmatprep.subr.mxu0 0.0
    %357 = vmatpush1.msra.mxu0 0.0
    %358 = vmatprep.subr.mxu0 0.0
    %359 = vmatpush1.msra.mxu0 0.0
    %360 = vmatprep.subr.mxu0 0.0
    %361 = vmatpush1.msra.mxu0 0.0
    %362 = vmatprep.subr.mxu0 0.0
    %363 = vmatpush1.msra.mxu0 0.0
    %364 = vmatprep.subr.mxu0 0.0
    %365 = vmatpush1.msra.mxu0 0.0
    %366 = vmatprep.subr.mxu0 0.0
    %367 = vmatpush1.msra.mxu0 0.0
    %368 = vmatprep.subr.mxu0 0.0
    %369 = vmatpush1.msra.mxu0 0.0
    %370 = vmatprep.subr.mxu0 0.0
    %371 = vmatpush1.msra.mxu0 0.0
    %372 = vmatprep.subr.mxu0 0.0
    %373 = vmatpush1.msra.mxu0 0.0
    %374 = vmatprep.subr.mxu0 0.0
    %375 = vmatpush1.msra.mxu0 0.0
    %376 = vmatprep.subr.mxu0 0.0
    %377 = vmatpush1.msra.mxu0 0.0
    %378 = vmatprep.mubr.f32.mxu0 0.0
    %379 = vmatmul.mubr.f32.gmra.mrb[0].mxu0 %v291
    %v380 = vpop.f32.mrb[0].mxu0
    %v381 = vadd.f32 %v288, %v380
    %v382 = vpop.f32.mrb[0].mxu0
    %383 = vmatprep.mubr.f32.mxu0 0.0
    %384 = vmatmul.mubr.f32.gmra.mrb[0].mxu0 %v294
    %v385 = vpop.f32.mrb[0].mxu0
    %v386 = vadd.f32 %v288, %v385
    %v387 = vpop.f32.mrb[0].mxu0
    %388 = vmatprep.mubr.f32.mxu0 0.0
    %389 = vmatmul.mubr.f32.gmra.mrb[0].mxu0 %v297
    %v390 = vpop.f32.mrb[0].mxu0
    %v391 = vadd.f32 %v288, %v390
    %v392 = vpop.f32.mrb[0].mxu0
    %393 = vmatprep.mubr.f32.mxu0 0.0
    %394 = vmatmul.mubr.f32.gmra.mrb[0].mxu0 %v300
    %v395 = vpop.f32.mrb[0].mxu0
    %v396 = vadd.f32 %v288, %v395
    %v397 = vpop.f32.mrb[0].mxu0
    %398 = vmatprep.mubr.f32.mxu0 0.0
    %399 = vmatmul.mubr.f32.gmra.mrb[0].mxu0 %v303
    %v400 = vpop.f32.mrb[0].mxu0
    %v401 = vadd.f32 %v288, %v400
    %v402 = vpop.f32.mrb[0].mxu0
    %403 = vmatprep.mubr.f32.mxu0 0.0
    %404 = vmatmul.mubr.f32.gmra.mrb[0].mxu0 %v306
    %v405 = vpop.f32.mrb[0].mxu0
    %v406 = vadd.f32 %v288, %v405
    %v407 = vpop.f32.mrb[0].mxu0
    %408 = vmatprep.mubr.f32.mxu0 0.0
    %409 = vmatmul.mubr.f32.gmra.mrb[0].mxu0 %v309
    %v410 = vpop.f32.mrb[0].mxu0
    %v411 = vadd.f32 %v288, %v410
    %v412 = vpop.f32.mrb[0].mxu0
    %413 = vmatprep.mubr.f32.mxu0 0.0
    %414 = vmatmul.mubr.f32.gmra.mrb[0].mxu0 %v312
    %v415 = vpop.f32.mrb[0].mxu0
    %v416 = vadd.f32 %v288, %v415
    %v417 = vpop.f32.mrb[0].mxu0
    %418 = vdwg.mxu0
    %v419 = vmax.f32 %v381, 0.0
    %v420 = vmax.f32 %v386, 0.0
    %v421 = vmax.f32 %v391, 0.0
    %v422 = vmax.f32 %v396, 0.0
    %v423 = vmax.f32 %v401, 0.0
    %v424 = vmax.f32 %v406, 0.0
    %v425 = vmax.f32 %v411, 0.0
    %v426 = vmax.f32 %v416, 0.0
    %v427 = vld [vmem:[%s3 + $0x8] sm:$0x3]
    %vm428 = vcmask 261120
    %v430 = vsel %vm428, %v419, 0
    %v433 = vsel %vm428, %v420, 0
    %v436 = vsel %vm428, %v421, 0
    %v439 = vsel %vm428, %v422, 0
    %v442 = vsel %vm428, %v423, 0
    %v445 = vsel %vm428, %v424, 0
    %v448 = vsel %vm428, %v425, 0
    %v451 = vsel %vm428, %v426, 0
    %v454 = vsel %vm428, %v427, 0
    %456 = vmatprep.subr.mxu0 0.0
    %457 = vmatpush1.xpose.msra.mxu0 %v454
    %458 = vmatprep.subr.mxu0 0.0
    %459 = vmatpush1.xpose.msra.mxu0 0.0
    %460 = vmatprep.subr.mxu0 0.0
    %461 = vmatpush1.xpose.msra.mxu0 0.0
    %462 = vmatprep.subr.mxu0 0.0
    %463 = vmatpush1.xpose.msra.mxu0 0.0
    %464 = vmatprep.subr.mxu0 0.0
    %465 = vmatpush1.xpose.msra.mxu0 0.0
    %466 = vmatprep.subr.mxu0 0.0
    %467 = vmatpush1.xpose.msra.mxu0 0.0
    %468 = vmatprep.subr.mxu0 0.0
    %469 = vmatpush1.xpose.msra.mxu0 0.0
    %470 = vmatprep.subr.mxu0 0.0
    %471 = vmatpush1.xpose.msra.mxu0 0.0
    %472 = vmatprep.subr.mxu0 0.0
    %473 = vmatpush1.xpose.msra.mxu0 0.0
    %474 = vmatprep.subr.mxu0 0.0
    %475 = vmatpush1.xpose.msra.mxu0 0.0
    %476 = vmatprep.subr.mxu0 0.0
    %477 = vmatpush1.xpose.msra.mxu0 0.0
    %478 = vmatprep.subr.mxu0 0.0
    %479 = vmatpush1.xpose.msra.mxu0 0.0
    %480 = vmatprep.subr.mxu0 0.0
    %481 = vmatpush1.xpose.msra.mxu0 0.0
    %482 = vmatprep.subr.mxu0 0.0
    %483 = vmatpush1.xpose.msra.mxu0 0.0
    %484 = vmatprep.subr.mxu0 0.0
    %485 = vmatpush1.xpose.msra.mxu0 0.0
    %486 = vmatprep.subr.mxu0 0.0
    %487 = vmatpush1.xpose.msra.mxu0 0.0
    %488 = vmatprep.subr.mxu0 0.0
    %489 = vmatpush1.xpose.msra.mxu0 0.0
    %490 = vmatprep.subr.mxu0 0.0
    %491 = vmatpush1.xpose.msra.mxu0 0.0
    %492 = vmatprep.subr.mxu0 0.0
    %493 = vmatpush1.xpose.msra.mxu0 0.0
    %494 = vmatprep.subr.mxu0 0.0
    %495 = vmatpush1.xpose.msra.mxu0 0.0
    %496 = vmatprep.subr.mxu0 0.0
    %497 = vmatpush1.xpose.msra.mxu0 0.0
    %498 = vmatprep.subr.mxu0 0.0
    %499 = vmatpush1.xpose.msra.mxu0 0.0
    %500 = vmatprep.subr.mxu0 0.0
    %501 = vmatpush1.xpose.msra.mxu0 0.0
    %502 = vmatprep.subr.mxu0 0.0
    %503 = vmatpush1.xpose.msra.mxu0 0.0
    %504 = vmatprep.subr.mxu0 0.0
    %505 = vmatpush1.xpose.msra.mxu0 0.0
    %506 = vmatprep.subr.mxu0 0.0
    %507 = vmatpush1.xpose.msra.mxu0 0.0
    %508 = vmatprep.subr.mxu0 0.0
    %509 = vmatpush1.xpose.msra.mxu0 0.0
    %510 = vmatprep.subr.mxu0 0.0
    %511 = vmatpush1.xpose.msra.mxu0 0.0
    %512 = vmatprep.subr.mxu0 0.0
    %513 = vmatpush1.xpose.msra.mxu0 0.0
    %514 = vmatprep.subr.mxu0 0.0
    %515 = vmatpush1.xpose.msra.mxu0 0.0
    %516 = vmatprep.subr.mxu0 0.0
    %517 = vmatpush1.xpose.msra.mxu0 0.0
    %518 = vmatprep.subr.mxu0 0.0
    %519 = vmatpush1.xpose.msra.mxu0 0.0
    %520 = vmatprep.mubr.f32.mxu0 0.0
    %521 = vmatmul.mubr.f32.gmra.mrb[0].mxu0 %v430
    %v522 = vpop.f32.mrb[0].mxu0
    %v523 = vadd.f32 0.0, %v522
    %v524 = vpop.f32.mrb[0].mxu0
    %525 = vmatprep.mubr.f32.mxu0 0.0
    %526 = vmatmul.mubr.f32.gmra.mrb[0].mxu0 %v433
    %v527 = vpop.f32.mrb[0].mxu0
    %v528 = vadd.f32 0.0, %v527
    %v529 = vpop.f32.mrb[0].mxu0
    %530 = vmatprep.mubr.f32.mxu0 0.0
    %531 = vmatmul.mubr.f32.gmra.mrb[0].mxu0 %v436
    %v532 = vpop.f32.mrb[0].mxu0
    %v533 = vadd.f32 0.0, %v532
    %v534 = vpop.f32.mrb[0].mxu0
    %535 = vmatprep.mubr.f32.mxu0 0.0
    %536 = vmatmul.mubr.f32.gmra.mrb[0].mxu0 %v439
    %v537 = vpop.f32.mrb[0].mxu0
    %v538 = vadd.f32 0.0, %v537
    %v539 = vpop.f32.mrb[0].mxu0
    %540 = vmatprep.mubr.f32.mxu0 0.0
    %541 = vmatmul.mubr.f32.gmra.mrb[0].mxu0 %v442
    %v542 = vpop.f32.mrb[0].mxu0
    %v543 = vadd.f32 0.0, %v542
    %v544 = vpop.f32.mrb[0].mxu0
    %545 = vmatprep.mubr.f32.mxu0 0.0
    %546 = vmatmul.mubr.f32.gmra.mrb[0].mxu0 %v445
    %v547 = vpop.f32.mrb[0].mxu0
    %v548 = vadd.f32 0.0, %v547
    %v549 = vpop.f32.mrb[0].mxu0
    %550 = vmatprep.mubr.f32.mxu0 0.0
    %551 = vmatmul.mubr.f32.gmra.mrb[0].mxu0 %v448
    %v552 = vpop.f32.mrb[0].mxu0
    %v553 = vadd.f32 0.0, %v552
    %v554 = vpop.f32.mrb[0].mxu0
    %555 = vmatprep.mubr.f32.mxu0 0.0
    %556 = vmatmul.mubr.f32.gmra.mrb[0].mxu0 %v451
    %v557 = vpop.f32.mrb[0].mxu0
    %v558 = vadd.f32 0.0, %v557
    %v559 = vpop.f32.mrb[0].mxu0
    %560 = vdwg.mxu0
    %v561 = vmul.f32 %v523, %v123
    %v562 = vmul.f32 %v528, %v125
    %v563 = vmul.f32 %v533, %v127
    %v564 = vmul.f32 %v538, %v129
    %v565 = vmul.f32 %v543, %v131
    %v566 = vmul.f32 %v548, %v133
    %v567 = vmul.f32 %v553, %v135
    %v568 = vmul.f32 %v558, %v137
    %569 = vmatprep.subr.mxu0 0.0
    %570 = vmatpush1.msra.mxu0 %v561
    %571 = vmatprep.subr.mxu0 0.0
    %572 = vmatpush1.msra.mxu0 %v562
    %573 = vmatprep.subr.mxu0 0.0
    %574 = vmatpush1.msra.mxu0 %v563
    %575 = vmatprep.subr.mxu0 0.0
    %576 = vmatpush1.msra.mxu0 %v564
    %577 = vmatprep.subr.mxu0 0.0
    %578 = vmatpush1.msra.mxu0 %v565
    %579 = vmatprep.subr.mxu0 0.0
    %580 = vmatpush1.msra.mxu0 %v566
    %581 = vmatprep.subr.mxu0 0.0
    %582 = vmatpush1.msra.mxu0 %v567
    %583 = vmatprep.subr.mxu0 0.0
    %584 = vmatpush1.msra.mxu0 %v568
    %585 = vmatprep.subr.mxu0 0.0
    %586 = vmatpush1.msra.mxu0 0.0
    %587 = vmatprep.subr.mxu0 0.0
    %588 = vmatpush1.msra.mxu0 0.0
    %589 = vmatprep.subr.mxu0 0.0
    %590 = vmatpush1.msra.mxu0 0.0
    %591 = vmatprep.subr.mxu0 0.0
    %592 = vmatpush1.msra.mxu0 0.0
    %593 = vmatprep.subr.mxu0 0.0
    %594 = vmatpush1.msra.mxu0 0.0
    %595 = vmatprep.subr.mxu0 0.0
    %596 = vmatpush1.msra.mxu0 0.0
    %597 = vmatprep.subr.mxu0 0.0
    %598 = vmatpush1.msra.mxu0 0.0
    %599 = vmatprep.subr.mxu0 0.0
    %600 = vmatpush1.msra.mxu0 0.0
    %601 = vmatprep.subr.mxu0 0.0
    %602 = vmatpush1.msra.mxu0 0.0
    %603 = vmatprep.subr.mxu0 0.0
    %604 = vmatpush1.msra.mxu0 0.0
    %605 = vmatprep.subr.mxu0 0.0
    %606 = vmatpush1.msra.mxu0 0.0
    %607 = vmatprep.subr.mxu0 0.0
    %608 = vmatpush1.msra.mxu0 0.0
    %609 = vmatprep.subr.mxu0 0.0
    %610 = vmatpush1.msra.mxu0 0.0
    %611 = vmatprep.subr.mxu0 0.0
    %612 = vmatpush1.msra.mxu0 0.0
    %613 = vmatprep.subr.mxu0 0.0
    %614 = vmatpush1.msra.mxu0 0.0
    %615 = vmatprep.subr.mxu0 0.0
    %616 = vmatpush1.msra.mxu0 0.0
    %617 = vmatprep.subr.mxu0 0.0
    %618 = vmatpush1.msra.mxu0 0.0
    %619 = vmatprep.subr.mxu0 0.0
    %620 = vmatpush1.msra.mxu0 0.0
    %621 = vmatprep.subr.mxu0 0.0
    %622 = vmatpush1.msra.mxu0 0.0
    %623 = vmatprep.subr.mxu0 0.0
    %624 = vmatpush1.msra.mxu0 0.0
    %625 = vmatprep.subr.mxu0 0.0
    %626 = vmatpush1.msra.mxu0 0.0
    %627 = vmatprep.subr.mxu0 0.0
    %628 = vmatpush1.msra.mxu0 0.0
    %629 = vmatprep.subr.mxu0 0.0
    %630 = vmatpush1.msra.mxu0 0.0
    %631 = vmatprep.subr.mxu0 0.0
    %632 = vmatpush1.msra.mxu0 0.0
    %633 = vmatprep.mubr.f32.mxu0 0.0
    %634 = vmatmul.mubr.f32.gmra.mrb[0].mxu0 %v157
    %v635 = vpop.f32.mrb[0].mxu0
    %v636 = vadd.f32 0.0, %v635
    %v637 = vpop.f32.mrb[0].mxu0
    %638 = vmatprep.mubr.f32.mxu0 0.0
    %639 = vmatmul.mubr.f32.gmra.mrb[0].mxu0 %v160
    %v640 = vpop.f32.mrb[0].mxu0
    %v641 = vadd.f32 0.0, %v640
    %v642 = vpop.f32.mrb[0].mxu0
    %643 = vmatprep.mubr.f32.mxu0 0.0
    %644 = vmatmul.mubr.f32.gmra.mrb[0].mxu0 %v163
    %v645 = vpop.f32.mrb[0].mxu0
    %v646 = vadd.f32 0.0, %v645
    %v647 = vpop.f32.mrb[0].mxu0
    %648 = vmatprep.mubr.f32.mxu0 0.0
    %649 = vmatmul.mubr.f32.gmra.mrb[0].mxu0 %v166
    %v650 = vpop.f32.mrb[0].mxu0
    %v651 = vadd.f32 0.0, %v650
    %v652 = vpop.f32.mrb[0].mxu0
    %653 = vmatprep.mubr.f32.mxu0 0.0
    %654 = vmatmul.mubr.f32.gmra.mrb[0].mxu0 %v169
    %v655 = vpop.f32.mrb[0].mxu0
    %v656 = vadd.f32 0.0, %v655
    %v657 = vpop.f32.mrb[0].mxu0
    %658 = vmatprep.mubr.f32.mxu0 0.0
    %659 = vmatmul.mubr.f32.gmra.mrb[0].mxu0 %v172
    %v660 = vpop.f32.mrb[0].mxu0
    %v661 = vadd.f32 0.0, %v660
    %v662 = vpop.f32.mrb[0].mxu0
    %663 = vmatprep.mubr.f32.mxu0 0.0
    %664 = vmatmul.mubr.f32.gmra.mrb[0].mxu0 %v175
    %v665 = vpop.f32.mrb[0].mxu0
    %v666 = vadd.f32 0.0, %v665
    %v667 = vpop.f32.mrb[0].mxu0
    %668 = vmatprep.mubr.f32.mxu0 0.0
    %669 = vmatmul.mubr.f32.gmra.mrb[0].mxu0 %v178
    %v670 = vpop.f32.mrb[0].mxu0
    %v671 = vadd.f32 0.0, %v670
    %v672 = vpop.f32.mrb[0].mxu0
    %673 = vdwg.mxu0
    %s674 = sld [smem:[#allocation3 + $0xd]]
    %s675 = sld [smem:[#allocation3 + $0xe]]
    %v676 = vstv %s674
    %v677 = vadd.f32 %v636, %v676
    %v678 = vadd.f32 %v641, %v676
    %v679 = vadd.f32 %v646, %v676
    %v680 = vadd.f32 %v651, %v676
    %v681 = vadd.f32 %v656, %v676
    %v682 = vadd.f32 %v661, %v676
    %v683 = vadd.f32 %v666, %v676
    %v684 = vadd.f32 %v671, %v676
    %v685 = vmax.f32 %v677, 0.0
    %v686 = vmax.f32 %v678, 0.0
    %v687 = vmax.f32 %v679, 0.0
    %v688 = vmax.f32 %v680, 0.0
    %v689 = vmax.f32 %v681, 0.0
    %v690 = vmax.f32 %v682, 0.0
    %v691 = vmax.f32 %v683, 0.0
    %v692 = vmax.f32 %v684, 0.0
    %v693 = vstv %s675
    %v694 = vadd.f32 %v636, %v693
    %v695 = vadd.f32 %v641, %v693
    %v696 = vadd.f32 %v646, %v693
    %v697 = vadd.f32 %v651, %v693
    %v698 = vadd.f32 %v656, %v693
    %v699 = vadd.f32 %v661, %v693
    %v700 = vadd.f32 %v666, %v693
    %v701 = vadd.f32 %v671, %v693
    %v702 = vmax.f32 %v694, 0.0
    %v703 = vmax.f32 %v695, 0.0
    %v704 = vmax.f32 %v696, 0.0
    %v705 = vmax.f32 %v697, 0.0
    %v706 = vmax.f32 %v698, 0.0
    %v707 = vmax.f32 %v699, 0.0
    %v708 = vmax.f32 %v700, 0.0
    %v709 = vmax.f32 %v701, 0.0
    %s710 = sld [smem:[#allocation3]]
    %s711 = sld [smem:[#allocation3 + $0x4]]
    %s712 = sld [smem:[#allocation3 + $0x8]]
    %v713 = vstv %s710
    %v714 = vmul.f32 %v685, %v713
    %v715 = vmul.f32 %v686, %v713
    %v716 = vmul.f32 %v687, %v713
    %v717 = vmul.f32 %v688, %v713
    %v718 = vmul.f32 %v689, %v713
    %v719 = vmul.f32 %v690, %v713
    %v720 = vmul.f32 %v691, %v713
    %v721 = vmul.f32 %v692, %v713
    %v722 = vstv %s711
    %v723 = vadd.f32 %v714, %v722
    %v724 = vadd.f32 %v715, %v722
    %v725 = vadd.f32 %v716, %v722
    %v726 = vadd.f32 %v717, %v722
    %v727 = vadd.f32 %v718, %v722
    %v728 = vadd.f32 %v719, %v722
    %v729 = vadd.f32 %v720, %v722
    %v730 = vadd.f32 %v721, %v722
    %v731 = vtanh.pop %v723
    %v732 = vtanh.pop %v724
    %v733 = vtanh.pop %v725
    %v734 = vtanh.pop %v726
    %v735 = vtanh.pop %v727
    %v736 = vtanh.pop %v728
    %v737 = vtanh.pop %v729
    %v738 = vtanh.pop %v730
    %v739 = vmul.f32 %v731, %v731
    %v740 = vmul.f32 %v732, %v732
    %v741 = vmul.f32 %v733, %v733
    %v742 = vmul.f32 %v734, %v734
    %v743 = vmul.f32 %v735, %v735
    %v744 = vmul.f32 %v736, %v736
    %v745 = vmul.f32 %v737, %v737
    %v746 = vmul.f32 %v738, %v738
    %v747 = vsub.f32 1.0, %v739
    %v748 = vsub.f32 1.0, %v740
    %v749 = vsub.f32 1.0, %v741
    %v750 = vsub.f32 1.0, %v742
    %v751 = vsub.f32 1.0, %v743
    %v752 = vsub.f32 1.0, %v744
    %v753 = vsub.f32 1.0, %v745
    %v754 = vsub.f32 1.0, %v746
    %v755 = vmul.f32 %v747, %v713
    %v756 = vmul.f32 %v748, %v713
    %v757 = vmul.f32 %v749, %v713
    %v758 = vmul.f32 %v750, %v713
    %v759 = vmul.f32 %v751, %v713
    %v760 = vmul.f32 %v752, %v713
    %v761 = vmul.f32 %v753, %v713
    %v762 = vmul.f32 %v754, %v713
    %v763 = vstv %s712
    %v764 = vmul.f32 %v755, %v763
    %v765 = vmul.f32 %v756, %v763
    %v766 = vmul.f32 %v757, %v763
    %v767 = vmul.f32 %v758, %v763
    %v768 = vmul.f32 %v759, %v763
    %v769 = vmul.f32 %v760, %v763
    %v770 = vmul.f32 %v761, %v763
    %v771 = vmul.f32 %v762, %v763
    %v772 = vadd.f32 %v764, 1.0
    %v773 = vadd.f32 %v765, 1.0
    %v774 = vadd.f32 %v766, 1.0
    %v775 = vadd.f32 %v767, 1.0
    %v776 = vadd.f32 %v768, 1.0
    %v777 = vadd.f32 %v769, 1.0
    %v778 = vadd.f32 %v770, 1.0
    %v779 = vadd.f32 %v771, 1.0
    %v780 = vand.u32 2147483647, %v772
    %v781 = vand.u32 2147483647, %v773
    %v782 = vand.u32 2147483647, %v774
    %v783 = vand.u32 2147483647, %v775
    %v784 = vand.u32 2147483647, %v776
    %v785 = vand.u32 2147483647, %v777
    %v786 = vand.u32 2147483647, %v778
    %v787 = vand.u32 2147483647, %v779
    %v788 = vadd.f32 %v780, 1e-07
    %v789 = vadd.f32 %v781, 1e-07
    %v790 = vadd.f32 %v782, 1e-07
    %v791 = vadd.f32 %v783, 1e-07
    %v792 = vadd.f32 %v784, 1e-07
    %v793 = vadd.f32 %v785, 1e-07
    %v794 = vadd.f32 %v786, 1e-07
    %v795 = vadd.f32 %v787, 1e-07
    %v796 = vlog2.pop %v788
    %v797 = vmul.f32 %v796, 0.6931472
    %v798 = vlog2.pop %v789
    %v799 = vmul.f32 %v798, 0.6931472
    %v800 = vlog2.pop %v790
    %v801 = vmul.f32 %v800, 0.6931472
    %v802 = vlog2.pop %v791
    %v803 = vmul.f32 %v802, 0.6931472
    %v804 = vlog2.pop %v792
    %v805 = vmul.f32 %v804, 0.6931472
    %v806 = vlog2.pop %v793
    %v807 = vmul.f32 %v806, 0.6931472
    %v808 = vlog2.pop %v794
    %v809 = vmul.f32 %v808, 0.6931472
    %v810 = vlog2.pop %v795
    %v811 = vmul.f32 %v810, 0.6931472
    %v812 = vadd.f32 %v797, 0.0
    %v813 = vadd.f32 %v799, 0.0
    %v814 = vadd.f32 %v801, 0.0
    %v815 = vadd.f32 %v803, 0.0
    %v816 = vadd.f32 %v805, 0.0
    %v817 = vadd.f32 %v807, 0.0
    %v818 = vadd.f32 %v809, 0.0
    %v819 = vadd.f32 %v811, 0.0
    %v820 = vmul.f32 %v763, %v731
    %v821 = vmul.f32 %v763, %v732
    %v822 = vmul.f32 %v763, %v733
    %v823 = vmul.f32 %v763, %v734
    %v824 = vmul.f32 %v763, %v735
    %v825 = vmul.f32 %v763, %v736
    %v826 = vmul.f32 %v763, %v737
    %v827 = vmul.f32 %v763, %v738
    %v828 = vadd.f32 %v685, %v820
    %v829 = vadd.f32 %v686, %v821
    %v830 = vadd.f32 %v687, %v822
    %v831 = vadd.f32 %v688, %v823
    %v832 = vadd.f32 %v689, %v824
    %v833 = vadd.f32 %v690, %v825
    %v834 = vadd.f32 %v691, %v826
    %v835 = vadd.f32 %v692, %v827
    %s836 = sld [smem:[#allocation3 + $0x1]]
    %s837 = sld [smem:[#allocation3 + $0x5]]
    %s838 = sld [smem:[#allocation3 + $0x9]]
    %v839 = vstv %s836
    %v840 = vmul.f32 %v828, %v839
    %v841 = vmul.f32 %v829, %v839
    %v842 = vmul.f32 %v830, %v839
    %v843 = vmul.f32 %v831, %v839
    %v844 = vmul.f32 %v832, %v839
    %v845 = vmul.f32 %v833, %v839
    %v846 = vmul.f32 %v834, %v839
    %v847 = vmul.f32 %v835, %v839
    %v848 = vstv %s837
    %v849 = vadd.f32 %v840, %v848
    %v850 = vadd.f32 %v841, %v848
    %v851 = vadd.f32 %v842, %v848
    %v852 = vadd.f32 %v843, %v848
    %v853 = vadd.f32 %v844, %v848
    %v854 = vadd.f32 %v845, %v848
    %v855 = vadd.f32 %v846, %v848
    %v856 = vadd.f32 %v847, %v848
    %v857 = vtanh.pop %v849
    %v858 = vtanh.pop %v850
    %v859 = vtanh.pop %v851
    %v860 = vtanh.pop %v852
    %v861 = vtanh.pop %v853
    %v862 = vtanh.pop %v854
    %v863 = vtanh.pop %v855
    %v864 = vtanh.pop %v856
    %v865 = vmul.f32 %v857, %v857
    %v866 = vmul.f32 %v858, %v858
    %v867 = vmul.f32 %v859, %v859
    %v868 = vmul.f32 %v860, %v860
    %v869 = vmul.f32 %v861, %v861
    %v870 = vmul.f32 %v862, %v862
    %v871 = vmul.f32 %v863, %v863
    %v872 = vmul.f32 %v864, %v864
    %v873 = vsub.f32 1.0, %v865
    %v874 = vsub.f32 1.0, %v866
    %v875 = vsub.f32 1.0, %v867
    %v876 = vsub.f32 1.0, %v868
    %v877 = vsub.f32 1.0, %v869
    %v878 = vsub.f32 1.0, %v870
    %v879 = vsub.f32 1.0, %v871
    %v880 = vsub.f32 1.0, %v872
    %v881 = vmul.f32 %v873, %v839
    %v882 = vmul.f32 %v874, %v839
    %v883 = vmul.f32 %v875, %v839
    %v884 = vmul.f32 %v876, %v839
    %v885 = vmul.f32 %v877, %v839
    %v886 = vmul.f32 %v878, %v839
    %v887 = vmul.f32 %v879, %v839
    %v888 = vmul.f32 %v880, %v839
    %v889 = vstv %s838
    %v890 = vmul.f32 %v881, %v889
    %v891 = vmul.f32 %v882, %v889
    %v892 = vmul.f32 %v883, %v889
    %v893 = vmul.f32 %v884, %v889
    %v894 = vmul.f32 %v885, %v889
    %v895 = vmul.f32 %v886, %v889
    %v896 = vmul.f32 %v887, %v889
    %v897 = vmul.f32 %v888, %v889
    %v898 = vadd.f32 %v890, 1.0
    %v899 = vadd.f32 %v891, 1.0
    %v900 = vadd.f32 %v892, 1.0
    %v901 = vadd.f32 %v893, 1.0
    %v902 = vadd.f32 %v894, 1.0
    %v903 = vadd.f32 %v895, 1.0
    %v904 = vadd.f32 %v896, 1.0
    %v905 = vadd.f32 %v897, 1.0
    %v906 = vand.u32 2147483647, %v898
    %v907 = vand.u32 2147483647, %v899
    %v908 = vand.u32 2147483647, %v900
    %v909 = vand.u32 2147483647, %v901
    %v910 = vand.u32 2147483647, %v902
    %v911 = vand.u32 2147483647, %v903
    %v912 = vand.u32 2147483647, %v904
    %v913 = vand.u32 2147483647, %v905
    %v914 = vadd.f32 %v906, 1e-07
    %v915 = vadd.f32 %v907, 1e-07
    %v916 = vadd.f32 %v908, 1e-07
    %v917 = vadd.f32 %v909, 1e-07
    %v918 = vadd.f32 %v910, 1e-07
    %v919 = vadd.f32 %v911, 1e-07
    %v920 = vadd.f32 %v912, 1e-07
    %v921 = vadd.f32 %v913, 1e-07
    %v922 = vlog2.pop %v914
    %v923 = vmul.f32 %v922, 0.6931472
    %v924 = vlog2.pop %v915
    %v925 = vmul.f32 %v924, 0.6931472
    %v926 = vlog2.pop %v916
    %v927 = vmul.f32 %v926, 0.6931472
    %v928 = vlog2.pop %v917
    %v929 = vmul.f32 %v928, 0.6931472
    %v930 = vlog2.pop %v918
    %v931 = vmul.f32 %v930, 0.6931472
    %v932 = vlog2.pop %v919
    %v933 = vmul.f32 %v932, 0.6931472
    %v934 = vlog2.pop %v920
    %v935 = vmul.f32 %v934, 0.6931472
    %v936 = vlog2.pop %v921
    %v937 = vmul.f32 %v936, 0.6931472
    %v938 = vadd.f32 %v812, %v923
    %v939 = vadd.f32 %v813, %v925
    %v940 = vadd.f32 %v814, %v927
    %v941 = vadd.f32 %v815, %v929
    %v942 = vadd.f32 %v816, %v931
    %v943 = vadd.f32 %v817, %v933
    %v944 = vadd.f32 %v818, %v935
    %v945 = vadd.f32 %v819, %v937
    %v946 = vmul.f32 %v889, %v857
    %v947 = vmul.f32 %v889, %v858
    %v948 = vmul.f32 %v889, %v859
    %v949 = vmul.f32 %v889, %v860
    %v950 = vmul.f32 %v889, %v861
    %v951 = vmul.f32 %v889, %v862
    %v952 = vmul.f32 %v889, %v863
    %v953 = vmul.f32 %v889, %v864
    %v954 = vadd.f32 %v828, %v946
    %v955 = vadd.f32 %v829, %v947
    %v956 = vadd.f32 %v830, %v948
    %v957 = vadd.f32 %v831, %v949
    %v958 = vadd.f32 %v832, %v950
    %v959 = vadd.f32 %v833, %v951
    %v960 = vadd.f32 %v834, %v952
    %v961 = vadd.f32 %v835, %v953
    %s962 = sld [smem:[#allocation3 + $0x2]]
    %s963 = sld [smem:[#allocation3 + $0x6]]
    %s964 = sld [smem:[#allocation3 + $0xa]]
    %v965 = vstv %s962
    %v966 = vmul.f32 %v954, %v965
    %v967 = vmul.f32 %v955, %v965
    %v968 = vmul.f32 %v956, %v965
    %v969 = vmul.f32 %v957, %v965
    %v970 = vmul.f32 %v958, %v965
    %v971 = vmul.f32 %v959, %v965
    %v972 = vmul.f32 %v960, %v965
    %v973 = vmul.f32 %v961, %v965
    %v974 = vstv %s963
    %v975 = vadd.f32 %v966, %v974
    %v976 = vadd.f32 %v967, %v974
    %v977 = vadd.f32 %v968, %v974
    %v978 = vadd.f32 %v969, %v974
    %v979 = vadd.f32 %v970, %v974
    %v980 = vadd.f32 %v971, %v974
    %v981 = vadd.f32 %v972, %v974
    %v982 = vadd.f32 %v973, %v974
    %v983 = vtanh.pop %v975
    %v984 = vtanh.pop %v976
    %v985 = vtanh.pop %v977
    %v986 = vtanh.pop %v978
    %v987 = vtanh.pop %v979
    %v988 = vtanh.pop %v980
    %v989 = vtanh.pop %v981
    %v990 = vtanh.pop %v982
    %v991 = vmul.f32 %v983, %v983
    %v992 = vmul.f32 %v984, %v984
    %v993 = vmul.f32 %v985, %v985
    %v994 = vmul.f32 %v986, %v986
    %v995 = vmul.f32 %v987, %v987
    %v996 = vmul.f32 %v988, %v988
    %v997 = vmul.f32 %v989, %v989
    %v998 = vmul.f32 %v990, %v990
    %v999 = vsub.f32 1.0, %v991
    %v1000 = vsub.f32 1.0, %v992
    %v1001 = vsub.f32 1.0, %v993
    %v1002 = vsub.f32 1.0, %v994
    %v1003 = vsub.f32 1.0, %v995
    %v1004 = vsub.f32 1.0, %v996
    %v1005 = vsub.f32 1.0, %v997
    %v1006 = vsub.f32 1.0, %v998
    %v1007 = vmul.f32 %v999, %v965
    %v1008 = vmul.f32 %v1000, %v965
    %v1009 = vmul.f32 %v1001, %v965
    %v1010 = vmul.f32 %v1002, %v965
    %v1011 = vmul.f32 %v1003, %v965
    %v1012 = vmul.f32 %v1004, %v965
    %v1013 = vmul.f32 %v1005, %v965
    %v1014 = vmul.f32 %v1006, %v965
    %v1015 = vstv %s964
    %v1016 = vmul.f32 %v1007, %v1015
    %v1017 = vmul.f32 %v1008, %v1015
    %v1018 = vmul.f32 %v1009, %v1015
    %v1019 = vmul.f32 %v1010, %v1015
    %v1020 = vmul.f32 %v1011, %v1015
    %v1021 = vmul.f32 %v1012, %v1015
    %v1022 = vmul.f32 %v1013, %v1015
    %v1023 = vmul.f32 %v1014, %v1015
    %v1024 = vadd.f32 %v1016, 1.0
    %v1025 = vadd.f32 %v1017, 1.0
    %v1026 = vadd.f32 %v1018, 1.0
    %v1027 = vadd.f32 %v1019, 1.0
    %v1028 = vadd.f32 %v1020, 1.0
    %v1029 = vadd.f32 %v1021, 1.0
    %v1030 = vadd.f32 %v1022, 1.0
    %v1031 = vadd.f32 %v1023, 1.0
    %v1032 = vand.u32 2147483647, %v1024
    %v1033 = vand.u32 2147483647, %v1025
    %v1034 = vand.u32 2147483647, %v1026
    %v1035 = vand.u32 2147483647, %v1027
    %v1036 = vand.u32 2147483647, %v1028
    %v1037 = vand.u32 2147483647, %v1029
    %v1038 = vand.u32 2147483647, %v1030
    %v1039 = vand.u32 2147483647, %v1031
    %v1040 = vadd.f32 %v1032, 1e-07
    %v1041 = vadd.f32 %v1033, 1e-07
    %v1042 = vadd.f32 %v1034, 1e-07
    %v1043 = vadd.f32 %v1035, 1e-07
    %v1044 = vadd.f32 %v1036, 1e-07
    %v1045 = vadd.f32 %v1037, 1e-07
    %v1046 = vadd.f32 %v1038, 1e-07
    %v1047 = vadd.f32 %v1039, 1e-07
    %v1048 = vlog2.pop %v1040
    %v1049 = vmul.f32 %v1048, 0.6931472
    %v1050 = vlog2.pop %v1041
    %v1051 = vmul.f32 %v1050, 0.6931472
    %v1052 = vlog2.pop %v1042
    %v1053 = vmul.f32 %v1052, 0.6931472
    %v1054 = vlog2.pop %v1043
    %v1055 = vmul.f32 %v1054, 0.6931472
    %v1056 = vlog2.pop %v1044
    %v1057 = vmul.f32 %v1056, 0.6931472
    %v1058 = vlog2.pop %v1045
    %v1059 = vmul.f32 %v1058, 0.6931472
    %v1060 = vlog2.pop %v1046
    %v1061 = vmul.f32 %v1060, 0.6931472
    %v1062 = vlog2.pop %v1047
    %v1063 = vmul.f32 %v1062, 0.6931472
    %v1064 = vadd.f32 %v938, %v1049
    %v1065 = vadd.f32 %v939, %v1051
    %v1066 = vadd.f32 %v940, %v1053
    %v1067 = vadd.f32 %v941, %v1055
    %v1068 = vadd.f32 %v942, %v1057
    %v1069 = vadd.f32 %v943, %v1059
    %v1070 = vadd.f32 %v944, %v1061
    %v1071 = vadd.f32 %v945, %v1063
    %v1072 = vmul.f32 %v1015, %v983
    %v1073 = vmul.f32 %v1015, %v984
    %v1074 = vmul.f32 %v1015, %v985
    %v1075 = vmul.f32 %v1015, %v986
    %v1076 = vmul.f32 %v1015, %v987
    %v1077 = vmul.f32 %v1015, %v988
    %v1078 = vmul.f32 %v1015, %v989
    %v1079 = vmul.f32 %v1015, %v990
    %v1080 = vadd.f32 %v954, %v1072
    %v1081 = vadd.f32 %v955, %v1073
    %v1082 = vadd.f32 %v956, %v1074
    %v1083 = vadd.f32 %v957, %v1075
    %v1084 = vadd.f32 %v958, %v1076
    %v1085 = vadd.f32 %v959, %v1077
    %v1086 = vadd.f32 %v960, %v1078
    %v1087 = vadd.f32 %v961, %v1079
    %s1088 = sld [smem:[#allocation3 + $0x3]]
    %s1089 = sld [smem:[#allocation3 + $0x7]]
    %s1090 = sld [smem:[#allocation3 + $0xb]]
    %v1091 = vstv %s1088
    %v1092 = vmul.f32 %v1080, %v1091
    %v1093 = vmul.f32 %v1081, %v1091
    %v1094 = vmul.f32 %v1082, %v1091
    %v1095 = vmul.f32 %v1083, %v1091
    %v1096 = vmul.f32 %v1084, %v1091
    %v1097 = vmul.f32 %v1085, %v1091
    %v1098 = vmul.f32 %v1086, %v1091
    %v1099 = vmul.f32 %v1087, %v1091
    %v1100 = vstv %s1089
    %v1101 = vadd.f32 %v1092, %v1100
    %v1102 = vadd.f32 %v1093, %v1100
    %v1103 = vadd.f32 %v1094, %v1100
    %v1104 = vadd.f32 %v1095, %v1100
    %v1105 = vadd.f32 %v1096, %v1100
    %v1106 = vadd.f32 %v1097, %v1100
    %v1107 = vadd.f32 %v1098, %v1100
    %v1108 = vadd.f32 %v1099, %v1100
    %v1109 = vtanh.pop %v1101
    %v1110 = vtanh.pop %v1102
    %v1111 = vtanh.pop %v1103
    %v1112 = vtanh.pop %v1104
    %v1113 = vtanh.pop %v1105
    %v1114 = vtanh.pop %v1106
    %v1115 = vtanh.pop %v1107
    %v1116 = vtanh.pop %v1108
    %v1117 = vmul.f32 %v1109, %v1109
    %v1118 = vmul.f32 %v1110, %v1110
    %v1119 = vmul.f32 %v1111, %v1111
    %v1120 = vmul.f32 %v1112, %v1112
    %v1121 = vmul.f32 %v1113, %v1113
    %v1122 = vmul.f32 %v1114, %v1114
    %v1123 = vmul.f32 %v1115, %v1115
    %v1124 = vmul.f32 %v1116, %v1116
    %v1125 = vsub.f32 1.0, %v1117
    %v1126 = vsub.f32 1.0, %v1118
    %v1127 = vsub.f32 1.0, %v1119
    %v1128 = vsub.f32 1.0, %v1120
    %v1129 = vsub.f32 1.0, %v1121
    %v1130 = vsub.f32 1.0, %v1122
    %v1131 = vsub.f32 1.0, %v1123
    %v1132 = vsub.f32 1.0, %v1124
    %v1133 = vmul.f32 %v1125, %v1091
    %v1134 = vmul.f32 %v1126, %v1091
    %v1135 = vmul.f32 %v1127, %v1091
    %v1136 = vmul.f32 %v1128, %v1091
    %v1137 = vmul.f32 %v1129, %v1091
    %v1138 = vmul.f32 %v1130, %v1091
    %v1139 = vmul.f32 %v1131, %v1091
    %v1140 = vmul.f32 %v1132, %v1091
    %v1141 = vstv %s1090
    %v1142 = vmul.f32 %v1133, %v1141
    %v1143 = vmul.f32 %v1134, %v1141
    %v1144 = vmul.f32 %v1135, %v1141
    %v1145 = vmul.f32 %v1136, %v1141
    %v1146 = vmul.f32 %v1137, %v1141
    %v1147 = vmul.f32 %v1138, %v1141
    %v1148 = vmul.f32 %v1139, %v1141
    %v1149 = vmul.f32 %v1140, %v1141
    %v1150 = vadd.f32 %v1142, 1.0
    %v1151 = vadd.f32 %v1143, 1.0
    %v1152 = vadd.f32 %v1144, 1.0
    %v1153 = vadd.f32 %v1145, 1.0
    %v1154 = vadd.f32 %v1146, 1.0
    %v1155 = vadd.f32 %v1147, 1.0
    %v1156 = vadd.f32 %v1148, 1.0
    %v1157 = vadd.f32 %v1149, 1.0
    %v1158 = vand.u32 2147483647, %v1150
    %v1159 = vand.u32 2147483647, %v1151
    %v1160 = vand.u32 2147483647, %v1152
    %v1161 = vand.u32 2147483647, %v1153
    %v1162 = vand.u32 2147483647, %v1154
    %v1163 = vand.u32 2147483647, %v1155
    %v1164 = vand.u32 2147483647, %v1156
    %v1165 = vand.u32 2147483647, %v1157
    %v1166 = vadd.f32 %v1158, 1e-07
    %v1167 = vadd.f32 %v1159, 1e-07
    %v1168 = vadd.f32 %v1160, 1e-07
    %v1169 = vadd.f32 %v1161, 1e-07
    %v1170 = vadd.f32 %v1162, 1e-07
    %v1171 = vadd.f32 %v1163, 1e-07
    %v1172 = vadd.f32 %v1164, 1e-07
    %v1173 = vadd.f32 %v1165, 1e-07
    %v1174 = vlog2.pop %v1166
    %v1175 = vmul.f32 %v1174, 0.6931472
    %v1176 = vlog2.pop %v1167
    %v1177 = vmul.f32 %v1176, 0.6931472
    %v1178 = vlog2.pop %v1168
    %v1179 = vmul.f32 %v1178, 0.6931472
    %v1180 = vlog2.pop %v1169
    %v1181 = vmul.f32 %v1180, 0.6931472
    %v1182 = vlog2.pop %v1170
    %v1183 = vmul.f32 %v1182, 0.6931472
    %v1184 = vlog2.pop %v1171
    %v1185 = vmul.f32 %v1184, 0.6931472
    %v1186 = vlog2.pop %v1172
    %v1187 = vmul.f32 %v1186, 0.6931472
    %v1188 = vlog2.pop %v1173
    %v1189 = vmul.f32 %v1188, 0.6931472
    %v1190 = vadd.f32 %v1064, %v1175
    %v1191 = vadd.f32 %v1065, %v1177
    %v1192 = vadd.f32 %v1066, %v1179
    %v1193 = vadd.f32 %v1067, %v1181
    %v1194 = vadd.f32 %v1068, %v1183
    %v1195 = vadd.f32 %v1069, %v1185
    %v1196 = vadd.f32 %v1070, %v1187
    %v1197 = vadd.f32 %v1071, %v1189
    %v1198 = vmul.f32 %v1141, %v1109
    %v1199 = vmul.f32 %v1141, %v1110
    %v1200 = vmul.f32 %v1141, %v1111
    %v1201 = vmul.f32 %v1141, %v1112
    %v1202 = vmul.f32 %v1141, %v1113
    %v1203 = vmul.f32 %v1141, %v1114
    %v1204 = vmul.f32 %v1141, %v1115
    %v1205 = vmul.f32 %v1141, %v1116
    %v1206 = vadd.f32 %v1080, %v1198
    %v1207 = vadd.f32 %v1081, %v1199
    %v1208 = vadd.f32 %v1082, %v1200
    %v1209 = vadd.f32 %v1083, %v1201
    %v1210 = vadd.f32 %v1084, %v1202
    %v1211 = vadd.f32 %v1085, %v1203
    %v1212 = vadd.f32 %v1086, %v1204
    %v1213 = vadd.f32 %v1087, %v1205
    %v1214 = vmul.f32 %v702, 0.5
    %v1215 = vmul.f32 %v703, 0.5
    %v1216 = vmul.f32 %v704, 0.5
    %v1217 = vmul.f32 %v705, 0.5
    %v1218 = vmul.f32 %v706, 0.5
    %v1219 = vmul.f32 %v707, 0.5
    %v1220 = vmul.f32 %v708, 0.5
    %v1221 = vmul.f32 %v709, 0.5
    %v1222 = vmul.f32 %v1214, 1.442695
    %v1223 = vpow.pop %v1222
    %v1224 = vmul.f32 %v1215, 1.442695
    %v1225 = vpow.pop %v1224
    %v1226 = vmul.f32 %v1216, 1.442695
    %v1227 = vpow.pop %v1226
    %v1228 = vmul.f32 %v1217, 1.442695
    %v1229 = vpow.pop %v1228
    %v1230 = vmul.f32 %v1218, 1.442695
    %v1231 = vpow.pop %v1230
    %v1232 = vmul.f32 %v1219, 1.442695
    %v1233 = vpow.pop %v1232
    %v1234 = vmul.f32 %v1220, 1.442695
    %v1235 = vpow.pop %v1234
    %v1236 = vmul.f32 %v1221, 1.442695
    %v1237 = vpow.pop %v1236
    %v1238 = vsub.f32 %v685, %v685
    %v1239 = vsub.f32 %v686, %v686
    %v1240 = vsub.f32 %v687, %v687
    %v1241 = vsub.f32 %v688, %v688
    %v1242 = vsub.f32 %v689, %v689
    %v1243 = vsub.f32 %v690, %v690
    %v1244 = vsub.f32 %v691, %v691
    %v1245 = vsub.f32 %v692, %v692
    %1254 = vrot.lane.b32.xlu0 %v1223, 127
    %v1255 = vpop.permute.xlu0 %1254
    %1256 = vrot.lane.b32.xlu0 %v1225, 127
    %v1257 = vpop.permute.xlu0 %1256
    %1258 = vrot.lane.b32.xlu0 %v1227, 127
    %v1259 = vpop.permute.xlu0 %1258
    %1260 = vrot.lane.b32.xlu0 %v1229, 127
    %v1261 = vpop.permute.xlu0 %1260
    %1262 = vrot.lane.b32.xlu0 %v1231, 127
    %v1263 = vpop.permute.xlu0 %1262
    %1264 = vrot.lane.b32.xlu0 %v1233, 127
    %v1265 = vpop.permute.xlu0 %1264
    %1266 = vrot.lane.b32.xlu0 %v1235, 127
    %v1267 = vpop.permute.xlu0 %1266
    %1268 = vrot.lane.b32.xlu0 %v1237, 127
    %v1269 = vpop.permute.xlu0 %1268
    %v1278 = vrcp.pop %v1255
    %v1279 = vmul.f32 %v1238, %v1278
    %v1280 = vrcp.pop %v1257
    %v1281 = vmul.f32 %v1239, %v1280
    %v1282 = vrcp.pop %v1259
    %v1283 = vmul.f32 %v1240, %v1282
    %v1284 = vrcp.pop %v1261
    %v1285 = vmul.f32 %v1241, %v1284
    %v1286 = vrcp.pop %v1263
    %v1287 = vmul.f32 %v1242, %v1286
    %v1288 = vrcp.pop %v1265
    %v1289 = vmul.f32 %v1243, %v1288
    %v1290 = vrcp.pop %v1267
    %v1291 = vmul.f32 %v1244, %v1290
    %v1292 = vrcp.pop %v1269
    %v1293 = vmul.f32 %v1245, %v1292
    %v1294 = vmul.f32 %v1279, %v1279
    %v1295 = vmul.f32 %v1281, %v1281
    %v1296 = vmul.f32 %v1283, %v1283
    %v1297 = vmul.f32 %v1285, %v1285
    %v1298 = vmul.f32 %v1287, %v1287
    %v1299 = vmul.f32 %v1289, %v1289
    %v1300 = vmul.f32 %v1291, %v1291
    %v1301 = vmul.f32 %v1293, %v1293
    %v1302 = vmul.f32 %v1294, -0.5
    %v1303 = vmul.f32 %v1295, -0.5
    %v1304 = vmul.f32 %v1296, -0.5
    %v1305 = vmul.f32 %v1297, -0.5
    %v1306 = vmul.f32 %v1298, -0.5
    %v1307 = vmul.f32 %v1299, -0.5
    %v1308 = vmul.f32 %v1300, -0.5
    %v1309 = vmul.f32 %v1301, -0.5
    %v1310 = vmul.f32 %v1223, 2.5
    %v1311 = vmul.f32 %v1225, 2.5
    %v1312 = vmul.f32 %v1227, 2.5
    %v1313 = vmul.f32 %v1229, 2.5
    %v1314 = vmul.f32 %v1231, 2.5
    %v1315 = vmul.f32 %v1233, 2.5
    %v1316 = vmul.f32 %v1235, 2.5
    %v1317 = vmul.f32 %v1237, 2.5
    %v1318 = vlog2.pop %v1310
    %v1319 = vmul.f32 %v1318, 0.6931472
    %v1320 = vlog2.pop %v1311
    %v1321 = vmul.f32 %v1320, 0.6931472
    %v1322 = vlog2.pop %v1312
    %v1323 = vmul.f32 %v1322, 0.6931472
    %v1324 = vlog2.pop %v1313
    %v1325 = vmul.f32 %v1324, 0.6931472
    %v1326 = vlog2.pop %v1314
    %v1327 = vmul.f32 %v1326, 0.6931472
    %v1328 = vlog2.pop %v1315
    %v1329 = vmul.f32 %v1328, 0.6931472
    %v1330 = vlog2.pop %v1316
    %v1331 = vmul.f32 %v1330, 0.6931472
    %v1332 = vlog2.pop %v1317
    %v1333 = vmul.f32 %v1332, 0.6931472
    %1342 = vrot.lane.b32.xlu0 %v1319, 127
    %v1343 = vpop.permute.xlu0 %1342
    %1344 = vrot.lane.b32.xlu0 %v1321, 127
    %v1345 = vpop.permute.xlu0 %1344
    %1346 = vrot.lane.b32.xlu0 %v1323, 127
    %v1347 = vpop.permute.xlu0 %1346
    %1348 = vrot.lane.b32.xlu0 %v1325, 127
    %v1349 = vpop.permute.xlu0 %1348
    %1350 = vrot.lane.b32.xlu0 %v1327, 127
    %v1351 = vpop.permute.xlu0 %1350
    %1352 = vrot.lane.b32.xlu0 %v1329, 127
    %v1353 = vpop.permute.xlu0 %1352
    %1354 = vrot.lane.b32.xlu0 %v1331, 127
    %v1355 = vpop.permute.xlu0 %1354
    %1356 = vrot.lane.b32.xlu0 %v1333, 127
    %v1357 = vpop.permute.xlu0 %1356
    %v1366 = vsub.f32 %v1302, %v1343
    %v1367 = vsub.f32 %v1303, %v1345
    %v1368 = vsub.f32 %v1304, %v1347
    %v1369 = vsub.f32 %v1305, %v1349
    %v1370 = vsub.f32 %v1306, %v1351
    %v1371 = vsub.f32 %v1307, %v1353
    %v1372 = vsub.f32 %v1308, %v1355
    %v1373 = vsub.f32 %v1309, %v1357
    %v1374 = vmul.f32 %v1206, %v1206
    %v1375 = vmul.f32 %v1207, %v1207
    %v1376 = vmul.f32 %v1208, %v1208
    %v1377 = vmul.f32 %v1209, %v1209
    %v1378 = vmul.f32 %v1210, %v1210
    %v1379 = vmul.f32 %v1211, %v1211
    %v1380 = vmul.f32 %v1212, %v1212
    %v1381 = vmul.f32 %v1213, %v1213
    %v1382 = vmul.f32 %v1374, -0.5
    %v1383 = vmul.f32 %v1375, -0.5
    %v1384 = vmul.f32 %v1376, -0.5
    %v1385 = vmul.f32 %v1377, -0.5
    %v1386 = vmul.f32 %v1378, -0.5
    %v1387 = vmul.f32 %v1379, -0.5
    %v1388 = vmul.f32 %v1380, -0.5
    %v1389 = vmul.f32 %v1381, -0.5
    %v1390 = vsub.f32 %v1382, 0.91629076
    %v1391 = vsub.f32 %v1383, 0.91629076
    %v1392 = vsub.f32 %v1384, 0.91629076
    %v1393 = vsub.f32 %v1385, 0.91629076
    %v1394 = vsub.f32 %v1386, 0.91629076
    %v1395 = vsub.f32 %v1387, 0.91629076
    %v1396 = vsub.f32 %v1388, 0.91629076
    %v1397 = vsub.f32 %v1389, 0.91629076
    %v1398 = vsub.f32 %v1366, %v1190
    %v1399 = vsub.f32 %v1367, %v1191
    %v1400 = vsub.f32 %v1368, %v1192
    %v1401 = vsub.f32 %v1369, %v1193
    %v1402 = vsub.f32 %v1370, %v1194
    %v1403 = vsub.f32 %v1371, %v1195
    %v1404 = vsub.f32 %v1372, %v1196
    %v1405 = vsub.f32 %v1373, %v1197
    %v1406 = vsub.f32 %v1398, %v1390
    %v1407 = vsub.f32 %v1399, %v1391
    %v1408 = vsub.f32 %v1400, %v1392
    %v1409 = vsub.f32 %v1401, %v1393
    %v1410 = vsub.f32 %v1402, %v1394
    %v1411 = vsub.f32 %v1403, %v1395
    %v1412 = vsub.f32 %v1404, %v1396
    %v1413 = vsub.f32 %v1405, %v1397
    %vm1414 = vcmask 7168
    %v1415 = vsel %vm1414, %v1406, 0.0
    %v1416 = vsel %vm1414, %v1407, 0.0
    %v1417 = vadd.f32 %v1415, %v1416
    %v1418 = vsel %vm1414, %v1408, 0.0
    %v1419 = vadd.f32 %v1417, %v1418
    %v1420 = vsel %vm1414, %v1409, 0.0
    %v1421 = vadd.f32 %v1419, %v1420
    %v1422 = vsel %vm1414, %v1410, 0.0
    %v1423 = vadd.f32 %v1421, %v1422
    %v1424 = vsel %vm1414, %v1411, 0.0
    %v1425 = vadd.f32 %v1423, %v1424
    %v1426 = vsel %vm1414, %v1412, 0.0
    %v1427 = vadd.f32 %v1425, %v1426
    %v1428 = vsel %vm1414, %v1413, 0.0
    %v1429 = vadd.f32 %v1427, %v1428
    %1430 = vadd.xlane.f32.xlu0 %v1429
    %v1431 = vpop.xlane.xlu0 %1430
    %v1432 = vrot.slane %v1431, 4
    %v1433 = vadd.f32 %v1431, %v1432
    %v1434 = vrot.slane %v1433, 2
    %v1435 = vadd.f32 %v1433, %v1434
    %v1436 = vrot.slane %v1435, 1
    %v1437 = vadd.f32 %v1435, %v1436
    %s1438 = vtos %v1437
    %v1439 = vrcp.pop 64.0
    %s1440 = vtos %v1439
    %s1441 = smul.f32 %s1438, %s1440
    %s1442 = sld [smem:[#allocation3 + $0xc]]
    %v1443 = vstv %s1442
    %v1444 = vmul.f32 %v1443, %v1206
    %v1445 = vmul.f32 %v1443, %v1207
    %v1446 = vmul.f32 %v1443, %v1208
    %v1447 = vmul.f32 %v1443, %v1209
    %v1448 = vmul.f32 %v1443, %v1210
    %v1449 = vmul.f32 %v1443, %v1211
    %v1450 = vmul.f32 %v1443, %v1212
    %v1451 = vmul.f32 %v1443, %v1213
    %v1452 = vxor.u32 %v1444, 2147483648
    %v1453 = vxor.u32 %v1445, 2147483648
    %v1454 = vxor.u32 %v1446, 2147483648
    %v1455 = vxor.u32 %v1447, 2147483648
    %v1456 = vxor.u32 %v1448, 2147483648
    %v1457 = vxor.u32 %v1449, 2147483648
    %v1458 = vxor.u32 %v1450, 2147483648
    %v1459 = vxor.u32 %v1451, 2147483648
    %v1460 = vmul.f32 %v1452, 1.442695
    %v1461 = vpow.pop %v1460
    %v1462 = vmul.f32 %v1453, 1.442695
    %v1463 = vpow.pop %v1462
    %v1464 = vmul.f32 %v1454, 1.442695
    %v1465 = vpow.pop %v1464
    %v1466 = vmul.f32 %v1455, 1.442695
    %v1467 = vpow.pop %v1466
    %v1468 = vmul.f32 %v1456, 1.442695
    %v1469 = vpow.pop %v1468
    %v1470 = vmul.f32 %v1457, 1.442695
    %v1471 = vpow.pop %v1470
    %v1472 = vmul.f32 %v1458, 1.442695
    %v1473 = vpow.pop %v1472
    %v1474 = vmul.f32 %v1459, 1.442695
    %v1475 = vpow.pop %v1474
    %v1476 = vadd.f32 %v1461, 1.0
    %v1477 = vadd.f32 %v1463, 1.0
    %v1478 = vadd.f32 %v1465, 1.0
    %v1479 = vadd.f32 %v1467, 1.0
    %v1480 = vadd.f32 %v1469, 1.0
    %v1481 = vadd.f32 %v1471, 1.0
    %v1482 = vadd.f32 %v1473, 1.0
    %v1483 = vadd.f32 %v1475, 1.0
    %v1484 = vrcp.pop %v1476
    %v1485 = vmul.f32 1.0, %v1484
    %v1486 = vrcp.pop %v1477
    %v1487 = vmul.f32 1.0, %v1486
    %v1488 = vrcp.pop %v1478
    %v1489 = vmul.f32 1.0, %v1488
    %v1490 = vrcp.pop %v1479
    %v1491 = vmul.f32 1.0, %v1490
    %v1492 = vrcp.pop %v1480
    %v1493 = vmul.f32 1.0, %v1492
    %v1494 = vrcp.pop %v1481
    %v1495 = vmul.f32 1.0, %v1494
    %v1496 = vrcp.pop %v1482
    %v1497 = vmul.f32 1.0, %v1496
    %v1498 = vrcp.pop %v1483
    %v1499 = vmul.f32 1.0, %v1498
    %v1500 = vld [vmem:[%s3 + $0x11] sm:$0x1]
    %v1501 = vld [vmem:[%s3 + $0x12] sm:$0x1]
    %v1502 = vmul.f32 %v1485, %v123
    %v1503 = vmul.f32 %v1487, %v125
    %v1504 = vmul.f32 %v1489, %v127
    %v1505 = vmul.f32 %v1491, %v129
    %v1506 = vmul.f32 %v1493, %v131
    %v1507 = vmul.f32 %v1495, %v133
    %v1508 = vmul.f32 %v1497, %v135
    %v1509 = vmul.f32 %v1499, %v137
    %1510 = vmatprep.subr.mxu0 0.0
    %1511 = vmatpush1.msra.mxu0 %v1502
    %1512 = vmatprep.subr.mxu0 0.0
    %1513 = vmatpush1.msra.mxu0 %v1503
    %1514 = vmatprep.subr.mxu0 0.0
    %1515 = vmatpush1.msra.mxu0 %v1504
    %1516 = vmatprep.subr.mxu0 0.0
    %1517 = vmatpush1.msra.mxu0 %v1505
    %1518 = vmatprep.subr.mxu0 0.0
    %1519 = vmatpush1.msra.mxu0 %v1506
    %1520 = vmatprep.subr.mxu0 0.0
    %1521 = vmatpush1.msra.mxu0 %v1507
    %1522 = vmatprep.subr.mxu0 0.0
    %1523 = vmatpush1.msra.mxu0 %v1508
    %1524 = vmatprep.subr.mxu0 0.0
    %1525 = vmatpush1.msra.mxu0 %v1509
    %1526 = vmatprep.subr.mxu0 0.0
    %1527 = vmatpush1.msra.mxu0 0.0
    %1528 = vmatprep.subr.mxu0 0.0
    %1529 = vmatpush1.msra.mxu0 0.0
    %1530 = vmatprep.subr.mxu0 0.0
    %1531 = vmatpush1.msra.mxu0 0.0
    %1532 = vmatprep.subr.mxu0 0.0
    %1533 = vmatpush1.msra.mxu0 0.0
    %1534 = vmatprep.subr.mxu0 0.0
    %1535 = vmatpush1.msra.mxu0 0.0
    %1536 = vmatprep.subr.mxu0 0.0
    %1537 = vmatpush1.msra.mxu0 0.0
    %1538 = vmatprep.subr.mxu0 0.0
    %1539 = vmatpush1.msra.mxu0 0.0
    %1540 = vmatprep.subr.mxu0 0.0
    %1541 = vmatpush1.msra.mxu0 0.0
    %1542 = vmatprep.subr.mxu0 0.0
    %1543 = vmatpush1.msra.mxu0 0.0
    %1544 = vmatprep.subr.mxu0 0.0
    %1545 = vmatpush1.msra.mxu0 0.0
    %1546 = vmatprep.subr.mxu0 0.0
    %1547 = vmatpush1.msra.mxu0 0.0
    %1548 = vmatprep.subr.mxu0 0.0
    %1549 = vmatpush1.msra.mxu0 0.0
    %1550 = vmatprep.subr.mxu0 0.0
    %1551 = vmatpush1.msra.mxu0 0.0
    %1552 = vmatprep.subr.mxu0 0.0
    %1553 = vmatpush1.msra.mxu0 0.0
    %1554 = vmatprep.subr.mxu0 0.0
    %1555 = vmatpush1.msra.mxu0 0.0
    %1556 = vmatprep.subr.mxu0 0.0
    %1557 = vmatpush1.msra.mxu0 0.0
    %1558 = vmatprep.subr.mxu0 0.0
    %1559 = vmatpush1.msra.mxu0 0.0
    %1560 = vmatprep.subr.mxu0 0.0
    %1561 = vmatpush1.msra.mxu0 0.0
    %1562 = vmatprep.subr.mxu0 0.0
    %1563 = vmatpush1.msra.mxu0 0.0
    %1564 = vmatprep.subr.mxu0 0.0
    %1565 = vmatpush1.msra.mxu0 0.0
    %1566 = vmatprep.subr.mxu0 0.0
    %1567 = vmatpush1.msra.mxu0 0.0
    %1568 = vmatprep.subr.mxu0 0.0
    %1569 = vmatpush1.msra.mxu0 0.0
    %1570 = vmatprep.subr.mxu0 0.0
    %1571 = vmatpush1.msra.mxu0 0.0
    %1572 = vmatprep.subr.mxu0 0.0
    %1573 = vmatpush1.msra.mxu0 0.0
    %1574 = vmatprep.mubr.f32.mxu0 0.0
    %1575 = vmatmul.mubr.f32.gmra.mrb[0].mxu0 %v157
    %v1576 = vpop.f32.mrb[0].mxu0
    %v1577 = vadd.f32 0.0, %v1576
    %v1578 = vpop.f32.mrb[0].mxu0
    %1579 = vmatprep.mubr.f32.mxu0 0.0
    %1580 = vmatmul.mubr.f32.gmra.mrb[0].mxu0 %v160
    %v1581 = vpop.f32.mrb[0].mxu0
    %v1582 = vadd.f32 0.0, %v1581
    %v1583 = vpop.f32.mrb[0].mxu0
    %1584 = vmatprep.mubr.f32.mxu0 0.0
    %1585 = vmatmul.mubr.f32.gmra.mrb[0].mxu0 %v163
    %v1586 = vpop.f32.mrb[0].mxu0
    %v1587 = vadd.f32 0.0, %v1586
    %v1588 = vpop.f32.mrb[0].mxu0
    %1589 = vmatprep.mubr.f32.mxu0 0.0
    %1590 = vmatmul.mubr.f32.gmra.mrb[0].mxu0 %v166
    %v1591 = vpop.f32.mrb[0].mxu0
    %v1592 = vadd.f32 0.0, %v1591
    %v1593 = vpop.f32.mrb[0].mxu0
    %1594 = vmatprep.mubr.f32.mxu0 0.0
    %1595 = vmatmul.mubr.f32.gmra.mrb[0].mxu0 %v169
    %v1596 = vpop.f32.mrb[0].mxu0
    %v1597 = vadd.f32 0.0, %v1596
    %v1598 = vpop.f32.mrb[0].mxu0
    %1599 = vmatprep.mubr.f32.mxu0 0.0
    %1600 = vmatmul.mubr.f32.gmra.mrb[0].mxu0 %v172
    %v1601 = vpop.f32.mrb[0].mxu0
    %v1602 = vadd.f32 0.0, %v1601
    %v1603 = vpop.f32.mrb[0].mxu0
    %1604 = vmatprep.mubr.f32.mxu0 0.0
    %1605 = vmatmul.mubr.f32.gmra.mrb[0].mxu0 %v175
    %v1606 = vpop.f32.mrb[0].mxu0
    %v1607 = vadd.f32 0.0, %v1606
    %v1608 = vpop.f32.mrb[0].mxu0
    %1609 = vmatprep.mubr.f32.mxu0 0.0
    %1610 = vmatmul.mubr.f32.gmra.mrb[0].mxu0 %v178
    %v1611 = vpop.f32.mrb[0].mxu0
    %v1612 = vadd.f32 0.0, %v1611
    %v1613 = vpop.f32.mrb[0].mxu0
    %1614 = vdwg.mxu0
    %1616 = vset.pattern.permute.xlu0 0
    %1617 = vperm.xlu0 %1616, %v1577
    %v1618 = vpop.permute.xlu0 %1617
    %1621 = vset.pattern.permute.xlu0 0
    %1622 = vperm.xlu0 %1621, %v1582
    %v1623 = vpop.permute.xlu0 %1622
    %1626 = vset.pattern.permute.xlu0 0
    %1627 = vperm.xlu0 %1626, %v1587
    %v1628 = vpop.permute.xlu0 %1627
    %1631 = vset.pattern.permute.xlu0 0
    %1632 = vperm.xlu0 %1631, %v1592
    %v1633 = vpop.permute.xlu0 %1632
    %1636 = vset.pattern.permute.xlu0 0
    %1637 = vperm.xlu0 %1636, %v1597
    %v1638 = vpop.permute.xlu0 %1637
    %1641 = vset.pattern.permute.xlu0 0
    %1642 = vperm.xlu0 %1641, %v1602
    %v1643 = vpop.permute.xlu0 %1642
    %1646 = vset.pattern.permute.xlu0 0
    %1647 = vperm.xlu0 %1646, %v1607
    %v1648 = vpop.permute.xlu0 %1647
    %1651 = vset.pattern.permute.xlu0 0
    %1652 = vperm.xlu0 %1651, %v1612
    %v1653 = vpop.permute.xlu0 %1652
    %v1655 = vlaneseq
    %v1656 = vshrl.u32 %v1655, 7
    %v1657 = vsub.s32 0, %v1656
    %v1658 = vrot.slane %v1500, %v1657
    %v1659 = vmul.f32 %v1618, %v1658
    %v1660 = vmul.f32 %v1623, %v1658
    %v1661 = vmul.f32 %v1628, %v1658
    %v1662 = vmul.f32 %v1633, %v1658
    %v1663 = vmul.f32 %v1638, %v1658
    %v1664 = vmul.f32 %v1643, %v1658
    %v1665 = vmul.f32 %v1648, %v1658
    %v1666 = vmul.f32 %v1653, %v1658
    %v1667 = vlaneseq
    %v1668 = vshrl.u32 %v1667, 7
    %v1669 = vsub.s32 0, %v1668
    %v1670 = vrot.slane %v1501, %v1669
    %v1671 = vadd.f32 %v1659, %v1670
    %v1672 = vadd.f32 %v1660, %v1670
    %v1673 = vadd.f32 %v1661, %v1670
    %v1674 = vadd.f32 %v1662, %v1670
    %v1675 = vadd.f32 %v1663, %v1670
    %v1676 = vadd.f32 %v1664, %v1670
    %v1677 = vadd.f32 %v1665, %v1670
    %v1678 = vadd.f32 %v1666, %v1670
    %v1679 = vmax.f32 %v1671, 0.0
    %v1680 = vmax.f32 %v1672, 0.0
    %v1681 = vmax.f32 %v1673, 0.0
    %v1682 = vmax.f32 %v1674, 0.0
    %v1683 = vmax.f32 %v1675, 0.0
    %v1684 = vmax.f32 %v1676, 0.0
    %v1685 = vmax.f32 %v1677, 0.0
    %v1686 = vmax.f32 %v1678, 0.0
    %v1687 = vsub.f32 %v419, %v1679
    %v1688 = vsub.f32 %v420, %v1680
    %v1689 = vsub.f32 %v421, %v1681
    %v1690 = vsub.f32 %v422, %v1682
    %v1691 = vsub.f32 %v423, %v1683
    %v1692 = vsub.f32 %v424, %v1684
    %v1693 = vsub.f32 %v425, %v1685
    %v1694 = vsub.f32 %v426, %v1686
    %v1695 = vmul.f32 %v1687, %v1687
    %v1696 = vmul.f32 %v1688, %v1688
    %v1697 = vmul.f32 %v1689, %v1689
    %v1698 = vmul.f32 %v1690, %v1690
    %v1699 = vmul.f32 %v1691, %v1691
    %v1700 = vmul.f32 %v1692, %v1692
    %v1701 = vmul.f32 %v1693, %v1693
    %v1702 = vmul.f32 %v1694, %v1694
    %v1703 = vsel %vm428, %v1695, 0.0
    %v1704 = vsel %vm428, %v1696, 0.0
    %v1705 = vadd.f32 %v1703, %v1704
    %v1706 = vsel %vm428, %v1697, 0.0
    %v1707 = vadd.f32 %v1705, %v1706
    %v1708 = vsel %vm428, %v1698, 0.0
    %v1709 = vadd.f32 %v1707, %v1708
    %v1710 = vsel %vm428, %v1699, 0.0
    %v1711 = vadd.f32 %v1709, %v1710
    %v1712 = vsel %vm428, %v1700, 0.0
    %v1713 = vadd.f32 %v1711, %v1712
    %v1714 = vsel %vm428, %v1701, 0.0
    %v1715 = vadd.f32 %v1713, %v1714
    %v1716 = vsel %vm428, %v1702, 0.0
    %v1717 = vadd.f32 %v1715, %v1716
    %1718 = vadd.xlane.f32.xlu0 %v1717
    %v1719 = vpop.xlane.xlu0 %1718
    %v1720 = vrot.slane %v1719, 4
    %v1721 = vadd.f32 %v1719, %v1720
    %v1722 = vrot.slane %v1721, 2
    %v1723 = vadd.f32 %v1721, %v1722
    %v1724 = vrot.slane %v1723, 1
    %v1725 = vadd.f32 %v1723, %v1724
    %s1726 = vtos %v1725
    %v1727 = vrcp.pop 2048.0
    %s1728 = vtos %v1727
    %s1729 = smul.f32 %s1726, %s1728
    %1731 = vset.pattern.permute.xlu0 0
    %1732 = vperm.xlu0 %1731, %v1485
    %v1733 = vpop.permute.xlu0 %1732
    %1736 = vset.pattern.permute.xlu0 0
    %1737 = vperm.xlu0 %1736, %v1487
    %v1738 = vpop.permute.xlu0 %1737
    %1741 = vset.pattern.permute.xlu0 0
    %1742 = vperm.xlu0 %1741, %v1489
    %v1743 = vpop.permute.xlu0 %1742
    %1746 = vset.pattern.permute.xlu0 0
    %1747 = vperm.xlu0 %1746, %v1491
    %v1748 = vpop.permute.xlu0 %1747
    %1751 = vset.pattern.permute.xlu0 0
    %1752 = vperm.xlu0 %1751, %v1493
    %v1753 = vpop.permute.xlu0 %1752
    %1756 = vset.pattern.permute.xlu0 0
    %1757 = vperm.xlu0 %1756, %v1495
    %v1758 = vpop.permute.xlu0 %1757
    %1761 = vset.pattern.permute.xlu0 0
    %1762 = vperm.xlu0 %1761, %v1497
    %v1763 = vpop.permute.xlu0 %1762
    %1766 = vset.pattern.permute.xlu0 0
    %1767 = vperm.xlu0 %1766, %v1499
    %v1768 = vpop.permute.xlu0 %1767
    %v1770 = vmul.f32 %v419, %v1733
    %v1771 = vmul.f32 %v420, %v1738
    %v1772 = vmul.f32 %v421, %v1743
    %v1773 = vmul.f32 %v422, %v1748
    %v1774 = vmul.f32 %v423, %v1753
    %v1775 = vmul.f32 %v424, %v1758
    %v1776 = vmul.f32 %v425, %v1763
    %v1777 = vmul.f32 %v426, %v1768
    %v1778 = vsel %vm428, %v1770, 0.0
    %v1779 = vsel %vm428, %v1771, 0.0
    %v1780 = vadd.f32 %v1778, %v1779
    %v1781 = vrot.slane %v1780, 4
    %v1782 = vadd.f32 %v1780, %v1781
    %v1783 = vrot.slane %v1782, 2
    %v1784 = vadd.f32 %v1782, %v1783
    %v1785 = vrot.slane %v1784, 1
    %v1786 = vadd.f32 %v1784, %v1785
    %v1787 = vsel %vm428, %v1772, 0.0
    %v1788 = vsel %vm428, %v1773, 0.0
    %v1789 = vadd.f32 %v1787, %v1788
    %v1790 = vrot.slane %v1789, 4
    %v1791 = vadd.f32 %v1789, %v1790
    %v1792 = vrot.slane %v1791, 2
    %v1793 = vadd.f32 %v1791, %v1792
    %v1794 = vrot.slane %v1793, 1
    %v1795 = vadd.f32 %v1793, %v1794
    %v1796 = vsel %vm428, %v1774, 0.0
    %v1797 = vsel %vm428, %v1775, 0.0
    %v1798 = vadd.f32 %v1796, %v1797
    %v1799 = vrot.slane %v1798, 4
    %v1800 = vadd.f32 %v1798, %v1799
    %v1801 = vrot.slane %v1800, 2
    %v1802 = vadd.f32 %v1800, %v1801
    %v1803 = vrot.slane %v1802, 1
    %v1804 = vadd.f32 %v1802, %v1803
    %v1805 = vsel %vm428, %v1776, 0.0
    %v1806 = vsel %vm428, %v1777, 0.0
    %v1807 = vadd.f32 %v1805, %v1806
    %v1808 = vrot.slane %v1807, 4
    %v1809 = vadd.f32 %v1807, %v1808
    %v1810 = vrot.slane %v1809, 2
    %v1811 = vadd.f32 %v1809, %v1810
    %v1812 = vrot.slane %v1811, 1
    %v1813 = vadd.f32 %v1811, %v1812
    %v1814 = vld [vmem:[%s3 + $0x18] sm:$0xff]
    %v1815 = vld [vmem:[%s3 + $0x20] sm:$0xff]
    %v1816 = vld [vmem:[%s3 + $0x28] sm:$0xff]
    %v1817 = vld [vmem:[%s3 + $0x30] sm:$0xff]
    %v1818 = vld [vmem:[%s3 + $0x13] sm:$0x1]
    %v1819 = vld [vmem:[%s3 + $0x38] sm:$0xff]
    %v1820 = vld [vmem:[%s3 + $0x40] sm:$0xff]
    %v1821 = vld [vmem:[%s3 + $0x48] sm:$0xff]
    %v1822 = vld [vmem:[%s3 + $0x50] sm:$0xff]
    %v1823 = vld [vmem:[%s3 + $0x14] sm:$0x1]
    %v1824 = vlaneseq
    %v1825 = vshrl.u32 %v1824, 7
    %v1826 = vsub.s32 0, %v1825
    %v1827 = vrot.slane %v1818, %v1826
    %vm1832 = vcmask 1041409
    %v1833 = vsel %vm1832, %v1795, %v1786
    %vm1834 = vcmask 1042434
    %v1835 = vsel %vm1834, %v1804, %v1833
    %vm1836 = vcmask 1043459
    %v1837 = vsel %vm1836, %v1813, %v1835
    %v1838 = vsel %vm428, %v1837, 0
    %1840 = vmatprep.subr.mxu0 0.0
    %1841 = vmatpush1.msra.mxu0 %v1814
    %1842 = vmatprep.subr.mxu0 0.0
    %1843 = vmatpush1.msra.mxu0 %v1815
    %1844 = vmatprep.subr.mxu0 0.0
    %1845 = vmatpush1.msra.mxu0 %v1816
    %1846 = vmatprep.subr.mxu0 0.0
    %1847 = vmatpush1.msra.mxu0 %v1817
    %1848 = vmatprep.subr.mxu0 0.0
    %1849 = vmatpush1.msra.mxu0 0.0
    %1850 = vmatprep.subr.mxu0 0.0
    %1851 = vmatpush1.msra.mxu0 0.0
    %1852 = vmatprep.subr.mxu0 0.0
    %1853 = vmatpush1.msra.mxu0 0.0
    %1854 = vmatprep.subr.mxu0 0.0
    %1855 = vmatpush1.msra.mxu0 0.0
    %1856 = vmatprep.subr.mxu0 0.0
    %1857 = vmatpush1.msra.mxu0 0.0
    %1858 = vmatprep.subr.mxu0 0.0
    %1859 = vmatpush1.msra.mxu0 0.0
    %1860 = vmatprep.subr.mxu0 0.0
    %1861 = vmatpush1.msra.mxu0 0.0
    %1862 = vmatprep.subr.mxu0 0.0
    %1863 = vmatpush1.msra.mxu0 0.0
    %1864 = vmatprep.subr.mxu0 0.0
    %1865 = vmatpush1.msra.mxu0 0.0
    %1866 = vmatprep.subr.mxu0 0.0
    %1867 = vmatpush1.msra.mxu0 0.0
    %1868 = vmatprep.subr.mxu0 0.0
    %1869 = vmatpush1.msra.mxu0 0.0
    %1870 = vmatprep.subr.mxu0 0.0
    %1871 = vmatpush1.msra.mxu0 0.0
    %1872 = vmatprep.subr.mxu0 0.0
    %1873 = vmatpush1.msra.mxu0 0.0
    %1874 = vmatprep.subr.mxu0 0.0
    %1875 = vmatpush1.msra.mxu0 0.0
    %1876 = vmatprep.subr.mxu0 0.0
    %1877 = vmatpush1.msra.mxu0 0.0
    %1878 = vmatprep.subr.mxu0 0.0
    %1879 = vmatpush1.msra.mxu0 0.0
    %1880 = vmatprep.subr.mxu0 0.0
    %1881 = vmatpush1.msra.mxu0 0.0
    %1882 = vmatprep.subr.mxu0 0.0
    %1883 = vmatpush1.msra.mxu0 0.0
    %1884 = vmatprep.subr.mxu0 0.0
    %1885 = vmatpush1.msra.mxu0 0.0
    %1886 = vmatprep.subr.mxu0 0.0
    %1887 = vmatpush1.msra.mxu0 0.0
    %1888 = vmatprep.subr.mxu0 0.0
    %1889 = vmatpush1.msra.mxu0 0.0
    %1890 = vmatprep.subr.mxu0 0.0
    %1891 = vmatpush1.msra.mxu0 0.0
    %1892 = vmatprep.subr.mxu0 0.0
    %1893 = vmatpush1.msra.mxu0 0.0
    %1894 = vmatprep.subr.mxu0 0.0
    %1895 = vmatpush1.msra.mxu0 0.0
    %1896 = vmatprep.subr.mxu0 0.0
    %1897 = vmatpush1.msra.mxu0 0.0
    %1898 = vmatprep.subr.mxu0 0.0
    %1899 = vmatpush1.msra.mxu0 0.0
    %1900 = vmatprep.subr.mxu0 0.0
    %1901 = vmatpush1.msra.mxu0 0.0
    %1902 = vmatprep.subr.mxu0 0.0
    %1903 = vmatpush1.msra.mxu0 0.0
    %1904 = vmatprep.mubr.f32.mxu0 0.0
    %1905 = vmatmul.mubr.f32.gmra.mrb[0].mxu0 %v1838
    %v1906 = vpop.f32.mrb[0].mxu0
    %v1907 = vadd.f32 %v1827, %v1906
    %v1908 = vpop.f32.mrb[0].mxu0
    %1909 = vdwg.mxu0
    %v1910 = vmax.f32 %v1907, 0.0
    %v1911 = vlaneseq
    %v1912 = vshrl.u32 %v1911, 7
    %v1913 = vsub.s32 0, %v1912
    %v1914 = vrot.slane %v1823, %v1913
    %v1916 = vsel %vm428, %v1910, 0
    %1918 = vmatprep.subr.mxu0 0.0
    %1919 = vmatpush1.msra.mxu0 %v1819
    %1920 = vmatprep.subr.mxu0 0.0
    %1921 = vmatpush1.msra.mxu0 %v1820
    %1922 = vmatprep.subr.mxu0 0.0
    %1923 = vmatpush1.msra.mxu0 %v1821
    %1924 = vmatprep.subr.mxu0 0.0
    %1925 = vmatpush1.msra.mxu0 %v1822
    %1926 = vmatprep.subr.mxu0 0.0
    %1927 = vmatpush1.msra.mxu0 0.0
    %1928 = vmatprep.subr.mxu0 0.0
    %1929 = vmatpush1.msra.mxu0 0.0
    %1930 = vmatprep.subr.mxu0 0.0
    %1931 = vmatpush1.msra.mxu0 0.0
    %1932 = vmatprep.subr.mxu0 0.0
    %1933 = vmatpush1.msra.mxu0 0.0
    %1934 = vmatprep.subr.mxu0 0.0
    %1935 = vmatpush1.msra.mxu0 0.0
    %1936 = vmatprep.subr.mxu0 0.0
    %1937 = vmatpush1.msra.mxu0 0.0
    %1938 = vmatprep.subr.mxu0 0.0
    %1939 = vmatpush1.msra.mxu0 0.0
    %1940 = vmatprep.subr.mxu0 0.0
    %1941 = vmatpush1.msra.mxu0 0.0
    %1942 = vmatprep.subr.mxu0 0.0
    %1943 = vmatpush1.msra.mxu0 0.0
    %1944 = vmatprep.subr.mxu0 0.0
    %1945 = vmatpush1.msra.mxu0 0.0
    %1946 = vmatprep.subr.mxu0 0.0
    %1947 = vmatpush1.msra.mxu0 0.0
    %1948 = vmatprep.subr.mxu0 0.0
    %1949 = vmatpush1.msra.mxu0 0.0
    %1950 = vmatprep.subr.mxu0 0.0
    %1951 = vmatpush1.msra.mxu0 0.0
    %1952 = vmatprep.subr.mxu0 0.0
    %1953 = vmatpush1.msra.mxu0 0.0
    %1954 = vmatprep.subr.mxu0 0.0
    %1955 = vmatpush1.msra.mxu0 0.0
    %1956 = vmatprep.subr.mxu0 0.0
    %1957 = vmatpush1.msra.mxu0 0.0
    %1958 = vmatprep.subr.mxu0 0.0
    %1959 = vmatpush1.msra.mxu0 0.0
    %1960 = vmatprep.subr.mxu0 0.0
    %1961 = vmatpush1.msra.mxu0 0.0
    %1962 = vmatprep.subr.mxu0 0.0
    %1963 = vmatpush1.msra.mxu0 0.0
    %1964 = vmatprep.subr.mxu0 0.0
    %1965 = vmatpush1.msra.mxu0 0.0
    %1966 = vmatprep.subr.mxu0 0.0
    %1967 = vmatpush1.msra.mxu0 0.0
    %1968 = vmatprep.subr.mxu0 0.0
    %1969 = vmatpush1.msra.mxu0 0.0
    %1970 = vmatprep.subr.mxu0 0.0
    %1971 = vmatpush1.msra.mxu0 0.0
    %1972 = vmatprep.subr.mxu0 0.0
    %1973 = vmatpush1.msra.mxu0 0.0
    %1974 = vmatprep.subr.mxu0 0.0
    %1975 = vmatpush1.msra.mxu0 0.0
    %1976 = vmatprep.subr.mxu0 0.0
    %1977 = vmatpush1.msra.mxu0 0.0
    %1978 = vmatprep.subr.mxu0 0.0
    %1979 = vmatpush1.msra.mxu0 0.0
    %1980 = vmatprep.subr.mxu0 0.0
    %1981 = vmatpush1.msra.mxu0 0.0
    %1982 = vmatprep.mubr.f32.mxu0 0.0
    %1983 = vmatmul.mubr.f32.gmra.mrb[0].mxu0 %v1916
    %v1984 = vpop.f32.mrb[0].mxu0
    %v1985 = vadd.f32 %v1914, %v1984
    %v1986 = vpop.f32.mrb[0].mxu0
    %1987 = vdwg.mxu0
    %vm1988 = vcmask 27648
    %v1989 = vsel %vm1988, %v1985, -inf
    %1990 = vmax.xlane.f32.xlu0 %v1989
    %v1991 = vpop.xlane.xlu0 %1990
    %v1992 = vsub.f32 %v1985, %v1991
    %v1993 = vmul.f32 %v1992, 1.442695
    %v1994 = vpow.pop %v1993
    %v1995 = vsel %vm1988, %v1994, 0.0
    %1996 = vadd.xlane.f32.xlu0 %v1995
    %v1997 = vpop.xlane.xlu0 %1996
    %v1998 = vlog2.pop %v1997
    %v1999 = vmul.f32 %v1998, 0.6931472
    %v2000 = vadd.f32 %v1991, %v1999
    %v2001 = vsub.f32 %v1985, %v2000
    %v2002 = vlaneseq
    %v2003 = vand.u32 %v2002, 127
    %v2004 = vld [vmem:[%s2] sm:$0xf]
    %2005 = vset.pattern.permute.xlu0 0
    %2006 = vperm.xlu0 %2005, %v2004
    %v2007 = vpop.permute.xlu0 %2006
    %vm2008 = vcmp.eq.s32.totalorder %v2003, %v2007
    %v2009 = vsel %vm2008, 1, 0
    %v2010 = vcvt.s32.f32 %v2009
    %v2011 = vmul.f32 %v2010, %v2001
    %v2012 = vsel %vm1988, %v2011, 0.0
    %2013 = vadd.xlane.f32.xlu0 %v2012
    %v2014 = vpop.xlane.xlu0 %2013
    %v2015 = vrot.slane %v2014, 4
    %v2016 = vadd.f32 %v2014, %v2015
    %v2017 = vrot.slane %v2016, 2
    %v2018 = vadd.f32 %v2016, %v2017
    %v2019 = vrot.slane %v2018, 1
    %v2020 = vadd.f32 %v2018, %v2019
    %s2021 = vtos %v2020
    %s2022 = ssub.f32 0.0, %s2021
    %v2023 = vrcp.pop 4.0
    %s2024 = vtos %v2023
    %s2025 = smul.f32 %s2022, %s2024
    %v2026 = vsel %vm1988, %v2001, -inf
    %2027 = vmax.xlane.f32.xlu0 %v2026
    %v2028 = vpop.xlane.xlu0 %2027
    %vm2029 = vcmp.ge.f32.partialorder %v2001, %v2028
    %v2030 = vsel %vm2029, %v2003, 4
    %v2031 = vsel %vm1988, %v2030, 2147483647
    %v2032 = vand.u32 %v2031, 65535
    %v2033 = vshra.s32 %v2031, 16
    %v2034 = vcvt.s32.f32 %v2032
    %v2035 = vcvt.s32.f32 %v2033
    %2036 = vmin.xlane.f32.xlu0 %v2035
    %v2037 = vpop.xlane.xlu0 %2036
    %vm2038 = vcmp.eq.f32.partialorder %v2035, %v2037
    %v2039 = vsel %vm2038, %v2034, inf
    %2040 = vmin.xlane.f32.xlu0 %v2039
    %v2041 = vpop.xlane.xlu0 %2040
    %v2042 = vcvt.f32.s32 %v2041
    %v2043 = vcvt.f32.s32 %v2037
    %v2044 = vshll.u32 %v2043, 16
    %v2045 = vadd.s32 %v2044, %v2042
    %vm2046 = vcmp.eq.s32.totalorder %v2045, %v2004
    %v2047 = vsel %vm2046, 1, 0
    %v2048 = vcvt.s32.f32 %v2047
    %vm2049 = vcmask 3072
    %v2050 = vsel %vm2049, %v2048, 0.0
    %2051 = vadd.xlane.f32.xlu0 %v2050
    %v2052 = vpop.xlane.xlu0 %2051
    %v2053 = vrot.slane %v2052, 4
    %v2054 = vadd.f32 %v2052, %v2053
    %v2055 = vrot.slane %v2054, 2
    %v2056 = vadd.f32 %v2054, %v2055
    %v2057 = vrot.slane %v2056, 1
    %v2058 = vadd.f32 %v2056, %v2057
    %s2059 = vtos %v2058
    %v2060 = vrcp.pop 4.0
    %s2061 = vtos %v2060
    %s2062 = smul.f32 %s2059, %s2061
    %s2063 = sadd.f32 %s2025, %s1729
    %s2064 = sadd.f32 %s2063, %s1441
    %s2065 = scalar_lea.smem [#allocation6], 0
    %2066 = sst [smem:[%s2065]] %s2064
    %s2067 = scalar_lea.smem [#allocation6], 1
    %2068 = sst [smem:[%s2067]] %s2062
    // Predicated region
    $region26: #{fwd.1} parent=1 // pred_check
      _
    $region27: #{fwd.1} parent=1 // pred_check_branch
      %2070 = sbr.rel (0) target = $region29
    $region28: #{fwd.1} parent=1 // pred_region
      %s2072 = ssub.s32 16, 16
      %2073 = vsyncadd [#allocation5], %s2072
      %s2075 = sshll.u32 %s5, 4
      %s2076 = int_to_ptr.vmem [resolvable:$true] %s2075
      %2078 = dma.smem_to_vmem [#allocation6], 16, %s2076, [#allocation5]
    $region29: #{fwd.1} parent=1 // pred_fallthru
      _
    // Predicated region
    $region30: #{fwd.1} parent=1 // pred_check
      _
    $region31: #{fwd.1} parent=1 // pred_check_branch
      %2080 = sbr.rel (0) target = $region33
    $region32: #{fwd.1} parent=1 // pred_region
      %2081 = dma.done [#allocation5], 16
    $region33: #{fwd.1} parent=1 // pred_fallthru
      _
    %2082 = sfence
    %2083 = vsyncpa [#allocation4], 1
    %2084 = vsyncpa [#allocation5], 1

</llo_original>
